<compile_context>
chip_gen: v7x
topology: tpu7x:2x2x1
jax: 0.10.0
libtpu: 0.0.40
codegen_flags: <defaults>
</compile_context>

<pallas_src>
import jax
import jax.numpy as jnp
from jax.experimental import pallas as pl
from jax.experimental.pallas import tpu as pltpu

HIDDEN = 1000           # logical width (matches torch.nn.Linear(..., 1000))
HID_PAD = 1024          # padded width: multiple of 128 lanes / 256-wide MXU
TN = 256                # N-tile width of the streamed 1024x1024 layers (~1 MB/tile)
NT = HID_PAD // TN      # 4 N tiles per hidden layer
NUM_MID = 2             # streamed hidden layers: fc2, fc3


def _fused_mlp_kernel(x_ref, w1_ref, b1_ref, w23_ref, b23_ref, w5_ref, b5_ref,
                      o_ref, act_ref):
    l = pl.program_id(0)            # which streamed layer: 0 -> fc2, 1 -> fc3
    j = pl.program_id(1)            # which N tile of that layer
    last_l = pl.num_programs(0) - 1
    last_j = pl.num_programs(1) - 1

    in_slot = l & 1                 # act[in_slot]  : input of layer l
    out_slot = (l + 1) & 1          # act[out_slot] : output of layer l

    # Prologue (first grid step only): fc1 + ReLU into act[0].  w1 is tiny
    # (In x 1024) and held resident via a constant-index BlockSpec.
    @pl.when((l == 0) & (j == 0))
    def _():
        h1 = jnp.dot(x_ref[...], w1_ref[...],
                     preferred_element_type=jnp.float32)
        act_ref[0] = jnp.maximum(h1 + b1_ref[...], 0.0)

    # Streamed hidden layer: one (HID_PAD, TN) weight tile per grid step.
    w_tile = w23_ref[0]                                    # (HID_PAD, TN)
    y = jnp.dot(act_ref[in_slot], w_tile,
                preferred_element_type=jnp.float32)        # (B, TN)
    y = jnp.maximum(y + b23_ref[0], 0.0)
    col = pl.multiple_of(j * TN, TN)                       # 256-aligned lane offset
    act_ref[out_slot, :, pl.ds(col, TN)] = y               # unmasked lane-dense store

    # Epilogue (last grid step): fc5 as VPU multiply + lane reduction.
    # Padded lanes of w5 are zero, so this equals the logical 1000-wide dot.
    @pl.when((l == last_l) & (j == last_j))
    def _():
        h = act_ref[out_slot]                              # (B, HID_PAD)
        o = jnp.sum(h * w5_ref[...], axis=-1, keepdims=True)
        o_ref[...] = o + b5_ref[...]


def fused_mlp(x, w1, b1, w23, b23, w5, b5):
    """x: (B, In) f32.  Packed/padded params (see pack_params).  Returns (B, 1) f32."""
    B, In = x.shape
    assert B % 8 == 0, "batch must be a multiple of the f32 sublane tile (8)"
    assert w1.shape == (In, HID_PAD) and b1.shape == (1, HID_PAD)
    assert w23.shape == (NUM_MID, HID_PAD, HID_PAD)
    assert b23.shape == (NUM_MID, 1, HID_PAD)
    assert w5.shape == (1, HID_PAD) and b5.shape == (1, 1)
    return pl.pallas_call(
        _fused_mlp_kernel,
        out_shape=jax.ShapeDtypeStruct((B, 1), jnp.float32),
        grid_spec=pltpu.PrefetchScalarGridSpec(
            num_scalar_prefetch=0,
            grid=(NUM_MID, NT),                                      # layer outer, N tile inner
            in_specs=[
                pl.BlockSpec((B, In), lambda l, j: (0, 0)),          # x (resident)
                pl.BlockSpec((In, HID_PAD), lambda l, j: (0, 0)),    # w1 (resident)
                pl.BlockSpec((1, HID_PAD), lambda l, j: (0, 0)),     # b1 (resident)
                pl.BlockSpec((1, HID_PAD, TN), lambda l, j: (l, 0, j)),  # fc2/fc3 weight tile (streamed)
                pl.BlockSpec((1, 1, TN), lambda l, j: (l, 0, j)),        # fc2/fc3 bias tile
                pl.BlockSpec((1, HID_PAD), lambda l, j: (0, 0)),     # w5 row (resident)
                pl.BlockSpec((1, 1), lambda l, j: (0, 0)),           # b5 (resident)
            ],
            out_specs=pl.BlockSpec((B, 1), lambda l, j: (0, 0)),     # written once, in epilogue
            scratch_shapes=[pltpu.VMEM((2, B, HID_PAD), jnp.float32)],  # ping-pong activations
        ),
        # Layers chain through the scratch and the output block index is
        # constant, so both grid axes must be sequential.
        compiler_params=pltpu.CompilerParams(
            dimension_semantics=("arbitrary", "arbitrary")),
    )(x, w1, b1, w23, b23, w5, b5)


def init_params(key, input_size):
    """PyTorch-Linear-style U(-1/sqrt(in), 1/sqrt(in)) init; weights stored
    pre-transposed as (in, out).  fc4 exists in __init__ but is unused in
    forward() (matches the PyTorch module); we create it for fidelity."""
    sizes = [
        ("fc1", input_size, HIDDEN),
        ("fc2", HIDDEN, HIDDEN),
        ("fc3", HIDDEN, HIDDEN),
        ("fc4", HIDDEN, HIDDEN),   # unused in forward
        ("fc5", HIDDEN, 1),
    ]
    params = {}
    for name, fin, fout in sizes:
        key, kw, kb = jax.random.split(key, 3)
        bound = 1.0 / jnp.sqrt(jnp.float32(fin))
        w = jax.random.uniform(kw, (fin, fout), jnp.float32, -bound, bound)
        b = jax.random.uniform(kb, (1, fout), jnp.float32, -bound, bound)
        params[name] = (w, b)
    return params


def pack_params(params):
    """Zero-pad HIDDEN -> HID_PAD (numerically inert through the ReLU chain and
    the zero-padded fc5 row) and stack fc2/fc3 into one streamable slab.
    Done once, outside the jitted forward."""
    pad = HID_PAD - HIDDEN
    w1, b1 = params["fc1"]
    w2, b2 = params["fc2"]
    w3, b3 = params["fc3"]
    w5, b5 = params["fc5"]
    w1p = jnp.pad(w1, ((0, 0), (0, pad)))
    b1p = jnp.pad(b1, ((0, 0), (0, pad)))
    w23 = jnp.stack([jnp.pad(w2, ((0, pad), (0, pad))),
                     jnp.pad(w3, ((0, pad), (0, pad)))], axis=0)     # (2, 1024, 1024)
    b23 = jnp.stack([jnp.pad(b2, ((0, 0), (0, pad))),
                     jnp.pad(b3, ((0, 0), (0, pad)))], axis=0)       # (2, 1, 1024)
    w5p = jnp.pad(w5.T, ((0, 0), (0, pad)))                          # (1, 1024), zero pad lanes
    return dict(w1=w1p, b1=b1p, w23=w23, b23=b23, w5=w5p, b5=b5)


@jax.jit
def net_forward(packed, x):
    """Net.forward: relu(fc1) -> relu(fc2) -> relu(fc3) -> fc5, single kernel."""
    return fused_mlp(x, packed["w1"], packed["b1"], packed["w23"],
                     packed["b23"], packed["w5"], packed["b5"])


if __name__ == "__main__":
    key = jax.random.PRNGKey(0)
    input_size = 32
    batch = 8                       # one exact f32 sublane tile

    kp, kx = jax.random.split(key)
    params = init_params(kp, input_size)
    packed = pack_params(params)    # pad + stack once, outside jit
    x = jax.random.normal(kx, (batch, input_size), jnp.float32)

    out = net_forward(packed, x)
    jax.block_until_ready(out)
    assert out.shape == (batch, 1) and out.dtype == jnp.float32

    # Plain-JAX reference of the same (unpadded) math.
    ref = x
    for name, act in [("fc1", True), ("fc2", True), ("fc3", True), ("fc5", False)]:
        w, b = params[name]
        ref = ref @ w + b
        if act:
            ref = jnp.maximum(ref, 0.0)
    assert jnp.allclose(out, ref, atol=1e-4, rtol=1e-4)

    print("KERNEL_OK")
</pallas_src>

<mosaic_0001>
module attributes {stable_mosaic.version = 11 : i64} {
  func.func @_fused_mlp_kernel(%arg0: i32, %arg1: i32, %arg2: memref<8x32xf32, #tpu.memory_space<vmem>>, %arg3: memref<32x1024xf32, #tpu.memory_space<vmem>>, %arg4: memref<1x1024xf32, #tpu.memory_space<vmem>>, %arg5: memref<1x1024x256xf32, #tpu.memory_space<vmem>>, %arg6: memref<1x1x256xf32, #tpu.memory_space<vmem>>, %arg7: memref<1x1024xf32, #tpu.memory_space<vmem>>, %arg8: memref<1x1xf32, #tpu.memory_space<vmem>>, %arg9: memref<8x1xf32, #tpu.memory_space<vmem>>, %arg10: memref<2x8x1024xf32, #tpu.memory_space<vmem>>) attributes {dimension_semantics = [#tpu.dimension_semantics<arbitrary>, #tpu.dimension_semantics<arbitrary>], iteration_bounds = array<i64: 2, 4>, scalar_prefetch = 0 : i64, scratch_operands = 1 : i64, tpu.core_type = #tpu.core_type<tc>, window_params = [{pipeline_mode = #tpu.pipeline_mode<synchronous>, transform_indices = @transform_0, window_bounds = array<i64: 8, 32>}, {pipeline_mode = #tpu.pipeline_mode<synchronous>, transform_indices = @transform_1, window_bounds = array<i64: 32, 1024>}, {pipeline_mode = #tpu.pipeline_mode<synchronous>, transform_indices = @transform_2, window_bounds = array<i64: 1, 1024>}, {transform_indices = @transform_3, window_bounds = array<i64: 1, 1024, 256>}, {transform_indices = @transform_4, window_bounds = array<i64: 1, 1, 256>}, {pipeline_mode = #tpu.pipeline_mode<synchronous>, transform_indices = @transform_5, window_bounds = array<i64: 1, 1024>}, {pipeline_mode = #tpu.pipeline_mode<synchronous>, transform_indices = @transform_6, window_bounds = array<i64: 1, 1>}, {pipeline_mode = #tpu.pipeline_mode<synchronous>, transform_indices = @transform_7, window_bounds = array<i64: 8, 1>}]} {
    %c1_i32 = arith.constant 1 : i32
    %0 = arith.andi %arg0, %c1_i32 : i32
    %c1_i32_0 = arith.constant 1 : i32
    %1 = arith.addi %arg0, %c1_i32_0 : i32
    %c1_i32_1 = arith.constant 1 : i32
    %2 = arith.andi %1, %c1_i32_1 : i32
    %c0_i32 = arith.constant 0 : i32
    %3 = arith.cmpi eq, %arg0, %c0_i32 : i32
    %c0_i32_2 = arith.constant 0 : i32
    %4 = arith.cmpi eq, %arg1, %c0_i32_2 : i32
    %5 = arith.andi %3, %4 : i1
    %6 = arith.extui %5 : i1 to i32
    %c0_i32_3 = arith.constant 0 : i32
    %7 = arith.cmpi ne, %6, %c0_i32_3 : i32
    scf.if %7 {
      %c0_15 = arith.constant 0 : index
      %c0_16 = arith.constant 0 : index
      %32 = vector.load %arg2[%c0_15, %c0_16] : memref<8x32xf32, #tpu.memory_space<vmem>>, vector<8x32xf32>
      %c0_17 = arith.constant 0 : index
      %c0_18 = arith.constant 0 : index
      %33 = vector.load %arg3[%c0_17, %c0_18] : memref<32x1024xf32, #tpu.memory_space<vmem>>, vector<32x1024xf32>
      %cst_19 = arith.constant dense<0.000000e+00> : vector<8x1024xf32>
      %34 = tpu.matmul %32, %33, %cst_19 {dimension_numbers = #tpu.dot_dimension_numbers<[1], [0], [0], [1], [0, 0, 1, 1], [], []>} : vector<8x32xf32>, vector<32x1024xf32>, vector<8x1024xf32> -> vector<8x1024xf32>
      %c0_20 = arith.constant 0 : index
      %c0_21 = arith.constant 0 : index
      %35 = vector.load %arg4[%c0_20, %c0_21] : memref<1x1024xf32, #tpu.memory_space<vmem>>, vector<1x1024xf32>
      %36 = vector.broadcast %35 : vector<1x1024xf32> to vector<8x1024xf32>
      %37 = arith.addf %34, %36 : vector<8x1024xf32>
      %cst_22 = arith.constant 0.000000e+00 : f32
      %38 = vector.broadcast %cst_22 : f32 to vector<8x1024xf32>
      %39 = arith.maximumf %37, %38 : vector<8x1024xf32>
      %c0_23 = arith.constant 0 : index
      %c0_24 = arith.constant 0 : index
      %c0_25 = arith.constant 0 : index
      %40 = vector.load %arg10[%c0_23, %c0_24, %c0_25] : memref<2x8x1024xf32, #tpu.memory_space<vmem>>, vector<1x8x1024xf32>
      %41 = vector.shape_cast %40 : vector<1x8x1024xf32> to vector<8x1024xf32>
      %42 = vector.shape_cast %39 : vector<8x1024xf32> to vector<1x8x1024xf32>
      tpu.vector_store %arg10[%c0_23, %c0_24, %c0_25], %42 {strides = array<i32>} : memref<2x8x1024xf32, #tpu.memory_space<vmem>>, vector<1x8x1024xf32>,
    } else {
    }
    %c0 = arith.constant 0 : index
    %c0_4 = arith.constant 0 : index
    %c0_5 = arith.constant 0 : index
    %8 = vector.load %arg5[%c0, %c0_4, %c0_5] : memref<1x1024x256xf32, #tpu.memory_space<vmem>>, vector<1x1024x256xf32>
    %9 = vector.shape_cast %8 : vector<1x1024x256xf32> to vector<1024x256xf32>
    %10 = arith.index_cast %0 : i32 to index
    %c0_6 = arith.constant 0 : index
    %c0_7 = arith.constant 0 : index
    %11 = vector.load %arg10[%10, %c0_6, %c0_7] : memref<2x8x1024xf32, #tpu.memory_space<vmem>>, vector<1x8x1024xf32>
    %12 = vector.shape_cast %11 : vector<1x8x1024xf32> to vector<8x1024xf32>
    %cst = arith.constant dense<0.000000e+00> : vector<8x256xf32>
    %13 = tpu.matmul %12, %9, %cst {dimension_numbers = #tpu.dot_dimension_numbers<[1], [0], [0], [1], [0, 0, 1, 1], [], []>} : vector<8x1024xf32>, vector<1024x256xf32>, vector<8x256xf32> -> vector<8x256xf32>
    %c0_8 = arith.constant 0 : index
    %c0_9 = arith.constant 0 : index
    %c0_10 = arith.constant 0 : index
    %14 = vector.load %arg6[%c0_8, %c0_9, %c0_10] : memref<1x1x256xf32, #tpu.memory_space<vmem>>, vector<1x1x256xf32>
    %15 = vector.shape_cast %14 : vector<1x1x256xf32> to vector<1x256xf32>
    %16 = vector.broadcast %15 : vector<1x256xf32> to vector<8x256xf32>
    %17 = arith.addf %13, %16 : vector<8x256xf32>
    %cst_11 = arith.constant 0.000000e+00 : f32
    %18 = vector.broadcast %cst_11 : f32 to vector<8x256xf32>
    %19 = arith.maximumf %17, %18 : vector<8x256xf32>
    %c256_i32 = arith.constant 256 : i32
    %20 = arith.muli %arg1, %c256_i32 : i32
    %21 = tpu.assume_multiple %20, 256 : i32
    %22 = arith.index_cast %2 : i32 to index
    %c0_12 = arith.constant 0 : index
    %23 = arith.index_cast %21 : i32 to index
    %24 = vector.load %arg10[%22, %c0_12, %23] : memref<2x8x1024xf32, #tpu.memory_space<vmem>>, vector<1x8x256xf32>
    %25 = vector.shape_cast %24 : vector<1x8x256xf32> to vector<8x256xf32>
    %26 = vector.shape_cast %19 : vector<8x256xf32> to vector<1x8x256xf32>
    tpu.vector_store %arg10[%22, %c0_12, %23], %26 {strides = array<i32>} : memref<2x8x1024xf32, #tpu.memory_space<vmem>>, vector<1x8x256xf32>,
    %c1_i32_13 = arith.constant 1 : i32
    %27 = arith.cmpi eq, %arg0, %c1_i32_13 : i32
    %c3_i32 = arith.constant 3 : i32
    %28 = arith.cmpi eq, %arg1, %c3_i32 : i32
    %29 = arith.andi %27, %28 : i1
    %30 = arith.extui %29 : i1 to i32
    %c0_i32_14 = arith.constant 0 : i32
    %31 = arith.cmpi ne, %30, %c0_i32_14 : i32
    scf.if %31 {
      %32 = arith.index_cast %2 : i32 to index
      %c0_15 = arith.constant 0 : index
      %c0_16 = arith.constant 0 : index
      %33 = vector.load %arg10[%32, %c0_15, %c0_16] : memref<2x8x1024xf32, #tpu.memory_space<vmem>>, vector<1x8x1024xf32>
      %34 = vector.shape_cast %33 : vector<1x8x1024xf32> to vector<8x1024xf32>
      %c0_17 = arith.constant 0 : index
      %c0_18 = arith.constant 0 : index
      %35 = vector.load %arg7[%c0_17, %c0_18] : memref<1x1024xf32, #tpu.memory_space<vmem>>, vector<1x1024xf32>
      %36 = vector.broadcast %35 : vector<1x1024xf32> to vector<8x1024xf32>
      %37 = arith.mulf %34, %36 : vector<8x1024xf32>
      %cst_19 = arith.constant dense<0.000000e+00> : vector<8xf32>
      %38 = vector.multi_reduction <add>, %37, %cst_19 [1] : vector<8x1024xf32> to vector<8xf32>
      %39 = vector.shape_cast %38 : vector<8xf32> to vector<8x1xf32>
      %c0_20 = arith.constant 0 : index
      %c0_21 = arith.constant 0 : index
      %40 = vector.load %arg8[%c0_20, %c0_21] : memref<1x1xf32, #tpu.memory_space<vmem>>, vector<1x1xf32>
      %41 = vector.broadcast %40 : vector<1x1xf32> to vector<8x1xf32>
      %42 = arith.addf %39, %41 : vector<8x1xf32>
      %c0_22 = arith.constant 0 : index
      %c0_23 = arith.constant 0 : index
      %43 = vector.load %arg9[%c0_22, %c0_23] : memref<8x1xf32, #tpu.memory_space<vmem>>, vector<8x1xf32>
      tpu.vector_store %arg9[%c0_22, %c0_23], %42 {strides = array<i32>} : memref<8x1xf32, #tpu.memory_space<vmem>>, vector<8x1xf32>,
    } else {
    }
    return
  }
  func.func @transform_0(%arg0: i32, %arg1: i32) -> (i32, i32) {
    %c0_i32 = arith.constant 0 : i32
    %c0_i32_0 = arith.constant 0 : i32
    %c0_i32_1 = arith.constant 0 : i32
    return %c0_i32, %c0_i32_0 : i32, i32
  }
  func.func @transform_1(%arg0: i32, %arg1: i32) -> (i32, i32) {
    %c0_i32 = arith.constant 0 : i32
    %c0_i32_0 = arith.constant 0 : i32
    %c0_i32_1 = arith.constant 0 : i32
    return %c0_i32, %c0_i32_0 : i32, i32
  }
  func.func @transform_2(%arg0: i32, %arg1: i32) -> (i32, i32) {
    %c0_i32 = arith.constant 0 : i32
    %c0_i32_0 = arith.constant 0 : i32
    %c0_i32_1 = arith.constant 0 : i32
    return %c0_i32, %c0_i32_0 : i32, i32
  }
  func.func @transform_3(%arg0: i32, %arg1: i32) -> (i32, i32, i32) {
    %c0_i32 = arith.constant 0 : i32
    %c0_i32_0 = arith.constant 0 : i32
    return %arg0, %c0_i32, %arg1 : i32, i32, i32
  }
  func.func @transform_4(%arg0: i32, %arg1: i32) -> (i32, i32, i32) {
    %c0_i32 = arith.constant 0 : i32
    %c0_i32_0 = arith.constant 0 : i32
    return %arg0, %c0_i32, %arg1 : i32, i32, i32
  }
  func.func @transform_5(%arg0: i32, %arg1: i32) -> (i32, i32) {
    %c0_i32 = arith.constant 0 : i32
    %c0_i32_0 = arith.constant 0 : i32
    %c0_i32_1 = arith.constant 0 : i32
    return %c0_i32, %c0_i32_0 : i32, i32
  }
  func.func @transform_6(%arg0: i32, %arg1: i32) -> (i32, i32) {
    %c0_i32 = arith.constant 0 : i32
    %c0_i32_0 = arith.constant 0 : i32
    %c0_i32_1 = arith.constant 0 : i32
    return %c0_i32, %c0_i32_0 : i32, i32
  }
  func.func @transform_7(%arg0: i32, %arg1: i32) -> (i32, i32) {
    %c0_i32 = arith.constant 0 : i32
    %c0_i32_0 = arith.constant 0 : i32
    %c0_i32_1 = arith.constant 0 : i32
    return %c0_i32, %c0_i32_0 : i32, i32
  }
}

</mosaic_0001>

<llo_original>
// kernel: net_forward.1
$region0: #{net_forward.1}
  #allocation0 [shape = 'u32[]', space=smem, size = 0x4, offset = 0x4, fixed_abs, tag = 'smem constant byte address 0x4 - core index']
  #allocation1 [shape = 'u32[144,128]{1,0:T(1,128)}', space=vmem, size = 0x12000, scoped, tag = 'internal scratch']
  #allocation2 [shape = 'f32[2,8,1024]{2,1,0:T(8,128)}', space=vmem, size = 0x10000, scoped, tag = 'scratch operand']
  #allocation3 [shape = 'f32[1,1]{1,0:T(1,128)S(1)}', space=vmem, size = 0x200, scoped, tag = 'scoped memory for net_forward.1']
  %s0 = inlined_call_operand.hbm [shape: f32[8,32], index: 0, kind: input, shape index: {}]
  %s1 = inlined_call_operand.hbm [shape: f32[32,1024], index: 1, kind: input, shape index: {}]
  %s2 = inlined_call_operand.hbm [shape: f32[1,1024], index: 2, kind: input, shape index: {}]
  %s3 = inlined_call_operand.hbm [shape: f32[2,1024,1024], index: 3, kind: input, shape index: {}]
  %s4 = inlined_call_operand.hbm [shape: f32[2,1,1024], index: 4, kind: input, shape index: {}]
  %s5 = inlined_call_operand.hbm [shape: f32[1,1024], index: 5, kind: input, shape index: {}]
  %s6 = inlined_call_operand.<no memory space> [shape: f32[1,1], index: 6, kind: input, shape index: {}]
  %s7 = inlined_call_operand.vmem [shape: f32[8,1], index: 7, kind: output, shape index: {}]
  %s8 = sld [smem:[#allocation0]]
  $region93: #{net_forward.1} parent=0
    _
  %s10 = ssub.s32 1, %s8
  %s11 = scalar_select 0, %s10, %s8
  %v12 = vstv %s6
  %13 = vst [vmem:[#allocation3] sm:$0x1] %v12
  $region1: #{net_forward.1} parent=0
    #allocation4 [shape = 'u8[4096]{0}', space=vmem, size = 0x1000, scoped, tag = 'input window, operand 0, single buffered']
    #allocation5 [shape = 's32[2]{0}', space=sflag, size = 0x8, scoped, tag = 'scoped memory for net_forward.1']
    #allocation6 [shape = 'u8[131072]{0}', space=vmem, size = 0x20000, scoped, tag = 'input window, operand 1, single buffered']
    #allocation7 [shape = 's32[1]{0}', space=sflag, size = 0x4, scoped, tag = 'scoped memory for net_forward.1']
    #allocation8 [shape = 'u8[4096]{0}', space=vmem, size = 0x1000, scoped, tag = 'input window, operand 2, single buffered']
    #allocation9 [shape = 'u8[2097152]{0}', space=vmem, size = 0x200000, scoped, tag = 'input window, operand 3']
    #allocation10 [shape = 's32[2]{0}', space=sflag, size = 0x8, scoped, tag = 'scoped memory for net_forward.1']
    #allocation11 [shape = 'u8[2048]{0}', space=vmem, size = 0x800, scoped, tag = 'input window, operand 4']
    #allocation12 [shape = 'u8[4096]{0}', space=vmem, size = 0x1000, scoped, tag = 'input window, operand 5, single buffered']
    #allocation13 [shape = 's32[1]{0}', space=sflag, size = 0x4, scoped, tag = 'scoped memory for net_forward.1']
    %14 = vsyncpa [#allocation5], 0
    %15 = vsyncpa [#allocation7], 0
    %16 = vsyncpa [#allocation10], 0
    %s17 = scalar_lea.sflag [#allocation10], 1
    %18 = vsyncpa %s17, 0
    %19 = vsyncpa [#allocation13], 0
    loop: start=0, step=1, limit=10
    $region2: #{net_forward.1} parent=1 // loop_pre_header
      _
    $region3: #{net_forward.1} parent=1 // loop_header
      %s21 = sphi 0, %s25
      %p22 = scmp.ge.s32.totalorder %s21, 10
      %s28 = sphi 0, %s40
      %s29 = sphi 0, %s36
      %s30 = sphi 0, %s28
      %s31 = sphi 0, %s29
      %s32 = sphi 0, %s30
      %s33 = sphi 0, %s31
      %s41 = sphi 0, %s41
      %s43 = sphi 0, %s41
      %s44 = sphi 0, %s43
      %s58 = sphi 0, %s44
      %s62 = sphi 0, %s62
      %s64 = sphi 0, %s62
      %s65 = sphi 0, %s64
      %s79 = sphi 0, %s65
      %s83 = sphi 0, %s83
      %s85 = sphi 0, %s83
      %s86 = sphi 0, %s85
      %s100 = sphi 0, %s86
      %s108 = sphi 0, %s110
      %s111 = sphi 0, %s108
      %s112 = sphi 0, %s111
      %s128 = sphi 0, %s112
      %s136 = sphi 0, %s138
      %s139 = sphi 0, %s136
      %s140 = sphi 0, %s139
      %s156 = sphi 0, %s140
      %s160 = sphi 0, %s160
      %s162 = sphi 0, %s160
      %s163 = sphi 0, %s162
      %s177 = sphi 0, %s163
      %s181 = sphi 0, %s181
      %s183 = sphi 0, %s181
      %s184 = sphi 0, %s183
      %s198 = sphi 0, %s184
      %s202 = sphi 0, %s202
      %s204 = sphi 0, %s202
      %s205 = sphi 0, %s204
      %s219 = sphi 0, %s205
    $region4: #{net_forward.1} parent=1 // loop_header_branch
      %24 = sbr.rel (%p22) target = $region8
    $region5: #{net_forward.1} parent=1 // loop_body
      %s26 = ssub.s32 %s21, 1
      %s27 = ssub.s32 %s21, 2
      %s34 = sadd.s32 1, %s29
      %p35 = scmp.ge.s32.totalorder %s34, 4
      %s36 = scalar_select %p35, 0, %s34
      %s37 = sadd.s32 1, %s28
      %s38 = scalar_select %p35, %s37, %s28
      %p39 = scmp.ge.s32.totalorder %s38, 2
      %s40 = scalar_select %p39, 0, %s38
      %s42 = sadd.s32 %s41, 1
      %p45 = scmp.eq.s32.totalorder %s21, 7
      %p46 = scmp.ne.s32.totalorder %s41, %s43
      %p47 = scmp.eq.s32.totalorder %s21, 0
      %p48 = por %p46, %p47
      %p49 = scmp.ne.s32.totalorder %s41, %s43
      %p50 = scmp.eq.s32.totalorder %s26, 7
      %p51 = por %p49, %p50
      %p52 = scmp.ne.s32.totalorder %s43, %s44
      %p53 = scmp.eq.s32.totalorder %s26, 0
      %p54 = por %p52, %p53
      %p55 = scmp.ne.s32.totalorder %s43, %s44
      %p56 = scmp.eq.s32.totalorder %s27, 7
      %p57 = por %p55, %p56
      %p59 = scmp.ne.s32.totalorder %s44, %s58
      %p60 = scmp.eq.s32.totalorder %s27, 0
      %p61 = por %p59, %p60
      %s63 = sadd.s32 %s62, 1
      %p66 = scmp.eq.s32.totalorder %s21, 7
      %p67 = scmp.ne.s32.totalorder %s62, %s64
      %p68 = scmp.eq.s32.totalorder %s21, 0
      %p69 = por %p67, %p68
      %p70 = scmp.ne.s32.totalorder %s62, %s64
      %p71 = scmp.eq.s32.totalorder %s26, 7
      %p72 = por %p70, %p71
      %p73 = scmp.ne.s32.totalorder %s64, %s65
      %p74 = scmp.eq.s32.totalorder %s26, 0
      %p75 = por %p73, %p74
      %p76 = scmp.ne.s32.totalorder %s64, %s65
      %p77 = scmp.eq.s32.totalorder %s27, 7
      %p78 = por %p76, %p77
      %p80 = scmp.ne.s32.totalorder %s65, %s79
      %p81 = scmp.eq.s32.totalorder %s27, 0
      %p82 = por %p80, %p81
      %s84 = sadd.s32 %s83, 1
      %p87 = scmp.eq.s32.totalorder %s21, 7
      %p88 = scmp.ne.s32.totalorder %s83, %s85
      %p89 = scmp.eq.s32.totalorder %s21, 0
      %p90 = por %p88, %p89
      %p91 = scmp.ne.s32.totalorder %s83, %s85
      %p92 = scmp.eq.s32.totalorder %s26, 7
      %p93 = por %p91, %p92
      %p94 = scmp.ne.s32.totalorder %s85, %s86
      %p95 = scmp.eq.s32.totalorder %s26, 0
      %p96 = por %p94, %p95
      %p97 = scmp.ne.s32.totalorder %s85, %s86
      %p98 = scmp.eq.s32.totalorder %s27, 7
      %p99 = por %p97, %p98
      %p101 = scmp.ne.s32.totalorder %s86, %s100
      %p102 = scmp.eq.s32.totalorder %s27, 0
      %p103 = por %p101, %p102
      %s104 = ssub.s32 %s28, %s40
      %s105 = ssub.s32 %s29, %s36
      %s106 = sor.u32 %s104, %s105
      %p107 = scmp.eq.s32.totalorder %s106, 0
      %s109 = sadd.s32 %s108, 1
      %s110 = scalar_select %p107, %s108, %s109
      %p113 = pneg %p107
      %p114 = scmp.eq.s32.totalorder %s21, 7
      %p115 = por %p113, %p114
      %p116 = scmp.ne.s32.totalorder %s108, %s111
      %p117 = scmp.eq.s32.totalorder %s21, 0
      %p118 = por %p116, %p117
      %p119 = scmp.ne.s32.totalorder %s108, %s111
      %p120 = scmp.eq.s32.totalorder %s26, 7
      %p121 = por %p119, %p120
      %p122 = scmp.ne.s32.totalorder %s111, %s112
      %p123 = scmp.eq.s32.totalorder %s26, 0
      %p124 = por %p122, %p123
      %p125 = scmp.ne.s32.totalorder %s111, %s112
      %p126 = scmp.eq.s32.totalorder %s27, 7
      %p127 = por %p125, %p126
      %p129 = scmp.ne.s32.totalorder %s112, %s128
      %p130 = scmp.eq.s32.totalorder %s27, 0
      %p131 = por %p129, %p130
      %s132 = ssub.s32 %s28, %s40
      %s133 = ssub.s32 %s29, %s36
      %s134 = sor.u32 %s132, %s133
      %p135 = scmp.eq.s32.totalorder %s134, 0
      %s137 = sadd.s32 %s136, 1
      %s138 = scalar_select %p135, %s136, %s137
      %p141 = pneg %p135
      %p142 = scmp.eq.s32.totalorder %s21, 7
      %p143 = por %p141, %p142
      %p144 = scmp.ne.s32.totalorder %s136, %s139
      %p145 = scmp.eq.s32.totalorder %s21, 0
      %p146 = por %p144, %p145
      %p147 = scmp.ne.s32.totalorder %s136, %s139
      %p148 = scmp.eq.s32.totalorder %s26, 7
      %p149 = por %p147, %p148
      %p150 = scmp.ne.s32.totalorder %s139, %s140
      %p151 = scmp.eq.s32.totalorder %s26, 0
      %p152 = por %p150, %p151
      %p153 = scmp.ne.s32.totalorder %s139, %s140
      %p154 = scmp.eq.s32.totalorder %s27, 7
      %p155 = por %p153, %p154
      %p157 = scmp.ne.s32.totalorder %s140, %s156
      %p158 = scmp.eq.s32.totalorder %s27, 0
      %p159 = por %p157, %p158
      %s161 = sadd.s32 %s160, 1
      %p164 = scmp.eq.s32.totalorder %s21, 7
      %p165 = scmp.ne.s32.totalorder %s160, %s162
      %p166 = scmp.eq.s32.totalorder %s21, 0
      %p167 = por %p165, %p166
      %p168 = scmp.ne.s32.totalorder %s160, %s162
      %p169 = scmp.eq.s32.totalorder %s26, 7
      %p170 = por %p168, %p169
      %p171 = scmp.ne.s32.totalorder %s162, %s163
      %p172 = scmp.eq.s32.totalorder %s26, 0
      %p173 = por %p171, %p172
      %p174 = scmp.ne.s32.totalorder %s162, %s163
      %p175 = scmp.eq.s32.totalorder %s27, 7
      %p176 = por %p174, %p175
      %p178 = scmp.ne.s32.totalorder %s163, %s177
      %p179 = scmp.eq.s32.totalorder %s27, 0
      %p180 = por %p178, %p179
      %s182 = sadd.s32 %s181, 1
      %p185 = scmp.eq.s32.totalorder %s21, 7
      %p186 = scmp.ne.s32.totalorder %s181, %s183
      %p187 = scmp.eq.s32.totalorder %s21, 0
      %p188 = por %p186, %p187
      %p189 = scmp.ne.s32.totalorder %s181, %s183
      %p190 = scmp.eq.s32.totalorder %s26, 7
      %p191 = por %p189, %p190
      %p192 = scmp.ne.s32.totalorder %s183, %s184
      %p193 = scmp.eq.s32.totalorder %s26, 0
      %p194 = por %p192, %p193
      %p195 = scmp.ne.s32.totalorder %s183, %s184
      %p196 = scmp.eq.s32.totalorder %s27, 7
      %p197 = por %p195, %p196
      %p199 = scmp.ne.s32.totalorder %s184, %s198
      %p200 = scmp.eq.s32.totalorder %s27, 0
      %p201 = por %p199, %p200
      %s203 = sadd.s32 %s202, 1
      %p206 = scmp.eq.s32.totalorder %s21, 7
      %p207 = scmp.ne.s32.totalorder %s202, %s204
      %p208 = scmp.eq.s32.totalorder %s21, 0
      %p209 = por %p207, %p208
      %p210 = scmp.ne.s32.totalorder %s202, %s204
      %p211 = scmp.eq.s32.totalorder %s26, 7
      %p212 = por %p210, %p211
      %p213 = scmp.ne.s32.totalorder %s204, %s205
      %p214 = scmp.eq.s32.totalorder %s26, 0
      %p215 = por %p213, %p214
      %p216 = scmp.ne.s32.totalorder %s204, %s205
      %p217 = scmp.eq.s32.totalorder %s27, 7
      %p218 = por %p216, %p217
      %p220 = scmp.ne.s32.totalorder %s205, %s219
      %p221 = scmp.eq.s32.totalorder %s27, 0
      %p222 = por %p220, %p221
      %p223 = scmp.le.s32.totalorder 1, %s21
      %p224 = scmp.lt.s32.totalorder %s21, 9
      %p225 = pnand %p223, %p224
      %p226 = pneg %p225
      // Predicated region
      $region9: #{net_forward.1} parent=5 // pred_check
        _
      $region10: #{net_forward.1} parent=5 // pred_check_branch
        %228 = sbr.rel (%p225) target = $region12
      $region11: #{net_forward.1} parent=5 // pred_region
        %s229 = ssub.s32 %s21, 1
        // Predicated region
        $region13: #{net_forward.1} parent=11 // pred_check
          %p230 = pneg %p54
        $region14: #{net_forward.1} parent=11 // pred_check_branch
          %232 = sbr.rel (%p230) target = $region16
        $region15: #{net_forward.1} parent=11 // pred_region
          %s234 = ssub.s32 128, 128
          %235 = vsyncadd [#allocation5], %s234
          %s237 = sshll.u32 [#allocation4], 4
          %s238 = int_to_ptr.vmem [resolvable:$true] %s237
          %240 = dma.hbm_to_vmem [thread:$0]  %s0, 128, %s238, [#allocation5]
        $region16: #{net_forward.1} parent=11 // pred_fallthru
          _
        // Predicated region
        $region17: #{net_forward.1} parent=11 // pred_check
          %p241 = pneg %p75
        $region18: #{net_forward.1} parent=11 // pred_check_branch
          %243 = sbr.rel (%p241) target = $region20
        $region19: #{net_forward.1} parent=11 // pred_region
          %s245 = ssub.s32 4096, 4096
          %246 = vsyncadd [#allocation7], %s245
          %s247 = sshll.u32 [#allocation6], 4
          %s248 = int_to_ptr.vmem [resolvable:$true] %s247
          %253 = dma.hbm_to_vmem [thread:$0]  %s1, 4096, %s248, [#allocation7], 1024, 1024, 64
        $region20: #{net_forward.1} parent=11 // pred_fallthru
          _
        // Predicated region
        $region21: #{net_forward.1} parent=11 // pred_check
          %p254 = pneg %p96
        $region22: #{net_forward.1} parent=11 // pred_check_branch
          %256 = sbr.rel (%p254) target = $region24
        $region23: #{net_forward.1} parent=11 // pred_region
          %s258 = ssub.s32 128, 128
          %259 = vsyncadd [#allocation7], %s258
          %s261 = sshll.u32 [#allocation8], 4
          %s262 = int_to_ptr.vmem [resolvable:$true] %s261
          %264 = dma.hbm_to_vmem [thread:$0]  %s2, 128, %s262, [#allocation7]
        $region24: #{net_forward.1} parent=11 // pred_fallthru
          _
        // Predicated region
        $region25: #{net_forward.1} parent=11 // pred_check
          %p265 = pneg %p173
        $region26: #{net_forward.1} parent=11 // pred_check_branch
          %267 = sbr.rel (%p265) target = $region28
        $region27: #{net_forward.1} parent=11 // pred_region
          %s269 = ssub.s32 128, 128
          %270 = vsyncadd [#allocation13], %s269
          %s272 = sshll.u32 [#allocation12], 4
          %s273 = int_to_ptr.vmem [resolvable:$true] %s272
          %275 = dma.hbm_to_vmem [thread:$0]  %s5, 128, %s273, [#allocation13]
        $region28: #{net_forward.1} parent=11 // pred_fallthru
          _
        // Predicated region
        $region29: #{net_forward.1} parent=11 // pred_check
          %p276 = pneg %p194
        $region30: #{net_forward.1} parent=11 // pred_check_branch
          %278 = sbr.rel (%p276) target = $region32
        $region31: #{net_forward.1} parent=11 // pred_region
          _
        $region32: #{net_forward.1} parent=11 // pred_fallthru
          _
      $region12: #{net_forward.1} parent=5 // pred_fallthru
        _
      %p279 = scmp.lt.s32.totalorder %s21, 8
      // Predicated region
      $region33: #{net_forward.1} parent=5 // pred_check
        %p280 = pneg %p279
      $region34: #{net_forward.1} parent=5 // pred_check_branch
        %282 = sbr.rel (%p280) target = $region36
      $region35: #{net_forward.1} parent=5 // pred_region
        // Predicated region
        $region37: #{net_forward.1} parent=35 // pred_check
          %p283 = pneg %p118
        $region38: #{net_forward.1} parent=35 // pred_check_branch
          %285 = sbr.rel (%p283) target = $region40
        $region39: #{net_forward.1} parent=35 // pred_region
          %s286 = sand.u32 %s21, 1
          %s287 = scalar_lea.sflag [#allocation10], %s286
          %s288 = sand.u32 %s108, 1
          %s289 = smul.addr %s288, 2048
          %s290 = scalar_lea.vmem [#allocation9], %s289
          %s291 = smul.u32 2, %s29
          %s293 = ssub.s32 32768, 32768
          %294 = vsyncadd %s287, %s293
          %s295 = smul.addr %s28, 1024
          %s296 = sadd.s32 %s291, %s295
          %s297 = smul.addr %s296, 128
          %s298 = scalar_lea.hbm %s3, %s297
          %s299 = sshll.u32 %s290, 4
          %s300 = int_to_ptr.vmem [resolvable:$true] %s299
          %305 = dma.hbm_to_vmem [thread:$0]  %s298, 32768, %s300, %s287, 1024, 256, 16
        $region40: #{net_forward.1} parent=35 // pred_fallthru
          _
        // Predicated region
        $region41: #{net_forward.1} parent=35 // pred_check
          %p306 = pneg %p146
        $region42: #{net_forward.1} parent=35 // pred_check_branch
          %308 = sbr.rel (%p306) target = $region44
        $region43: #{net_forward.1} parent=35 // pred_region
          %s309 = sand.u32 %s21, 1
          %s310 = scalar_lea.sflag [#allocation10], %s309
          %s311 = sand.u32 %s136, 1
          %s312 = smul.addr %s311, 2
          %s313 = scalar_lea.vmem [#allocation11], %s312
          %s314 = smul.u32 2, %s29
          %s316 = ssub.s32 32, 32
          %317 = vsyncadd %s310, %s316
          %s318 = smul.addr %s28, 8
          %s319 = sadd.s32 %s314, %s318
          %s320 = smul.addr %s319, 16
          %s321 = scalar_lea.hbm %s4, %s320
          %s323 = sshll.u32 %s313, 4
          %s324 = int_to_ptr.vmem [resolvable:$true] %s323
          %326 = dma.hbm_to_vmem [thread:$0]  %s321, 32, %s324, %s310
        $region44: #{net_forward.1} parent=35 // pred_fallthru
          _
      $region36: #{net_forward.1} parent=5 // pred_fallthru
        _
      %p327 = scmp.le.s32.totalorder 1, %s21
      %p328 = scmp.lt.s32.totalorder %s21, 9
      %p329 = pnand %p327, %p328
      %p330 = pneg %p329
      // Predicated region
      $region45: #{net_forward.1} parent=5 // pred_check
        _
      $region46: #{net_forward.1} parent=5 // pred_check_branch
        %332 = sbr.rel (%p329) target = $region48
      $region47: #{net_forward.1} parent=5 // pred_region
        %s333 = ssub.s32 %s21, 1
        // Predicated region
        $region49: #{net_forward.1} parent=47 // pred_check
          %p334 = pneg %p54
        $region50: #{net_forward.1} parent=47 // pred_check_branch
          %336 = sbr.rel (%p334) target = $region52
        $region51: #{net_forward.1} parent=47 // pred_region
          %337 = dma.done [#allocation5], 128
        $region52: #{net_forward.1} parent=47 // pred_fallthru
          _
        // Predicated region
        $region53: #{net_forward.1} parent=47 // pred_check
          %p338 = pneg %p75
        $region54: #{net_forward.1} parent=47 // pred_check_branch
          %340 = sbr.rel (%p338) target = $region56
        $region55: #{net_forward.1} parent=47 // pred_region
          %341 = dma.done [#allocation7], 4096
        $region56: #{net_forward.1} parent=47 // pred_fallthru
          _
        // Predicated region
        $region57: #{net_forward.1} parent=47 // pred_check
          %p342 = pneg %p96
        $region58: #{net_forward.1} parent=47 // pred_check_branch
          %344 = sbr.rel (%p342) target = $region60
        $region59: #{net_forward.1} parent=47 // pred_region
          %345 = dma.done [#allocation7], 128
        $region60: #{net_forward.1} parent=47 // pred_fallthru
          _
        %s346 = sand.u32 %s26, 1
        %s347 = scalar_lea.sflag [#allocation10], %s346
        %s348 = sand.u32 %s111, 1
        %s349 = smul.addr %s348, 2048
        %s350 = scalar_lea.vmem [#allocation9], %s349
        // Predicated region
        $region61: #{net_forward.1} parent=47 // pred_check
          %p351 = pneg %p124
        $region62: #{net_forward.1} parent=47 // pred_check_branch
          %353 = sbr.rel (%p351) target = $region64
        $region63: #{net_forward.1} parent=47 // pred_region
          %354 = dma.done %s347, 32768
        $region64: #{net_forward.1} parent=47 // pred_fallthru
          _
        %s355 = sand.u32 %s26, 1
        %s356 = scalar_lea.sflag [#allocation10], %s355
        %s357 = sand.u32 %s139, 1
        %s358 = smul.addr %s357, 2
        %s359 = scalar_lea.vmem [#allocation11], %s358
        // Predicated region
        $region65: #{net_forward.1} parent=47 // pred_check
          %p360 = pneg %p152
        $region66: #{net_forward.1} parent=47 // pred_check_branch
          %362 = sbr.rel (%p360) target = $region68
        $region67: #{net_forward.1} parent=47 // pred_region
          %363 = dma.done %s356, 32
        $region68: #{net_forward.1} parent=47 // pred_fallthru
          _
        // Predicated region
        $region69: #{net_forward.1} parent=47 // pred_check
          %p364 = pneg %p173
        $region70: #{net_forward.1} parent=47 // pred_check_branch
          %366 = sbr.rel (%p364) target = $region72
        $region71: #{net_forward.1} parent=47 // pred_region
          %367 = dma.done [#allocation13], 128
        $region72: #{net_forward.1} parent=47 // pred_fallthru
          _
        %p368 = pneg %p54
        %p369 = pneg %p51
        %p370 = pneg %p75
        %p371 = pneg %p72
        %p372 = pneg %p96
        %p373 = pneg %p93
        %s374 = sand.u32 %s26, 1
        %s375 = scalar_lea.sflag [#allocation10], %s374
        %s376 = sand.u32 %s111, 1
        %s377 = smul.addr %s376, 2048
        %s378 = scalar_lea.vmem [#allocation9], %s377
        %p379 = pneg %p124
        %p380 = pneg %p121
        %s381 = sand.u32 %s26, 1
        %s382 = scalar_lea.sflag [#allocation10], %s381
        %s383 = sand.u32 %s139, 1
        %s384 = smul.addr %s383, 2
        %s385 = scalar_lea.vmem [#allocation11], %s384
        %p386 = pneg %p152
        %p387 = pneg %p149
        %p388 = pneg %p173
        %p389 = pneg %p170
        %p390 = pneg %p194
        %p391 = pneg %p191
        %p392 = pneg %p215
        %p393 = pneg %p212
        %s394 = smul.u32 2, %s31
        %s395 = smul.u32 2, %s31
        %s396 = sand.u32 %s30, 1
        %s397 = sadd.s32 %s30, 1
        %s398 = sand.u32 %s397, 1
        %p399 = scmp.eq.s32.totalorder %s30, 0
        %p400 = scmp.eq.s32.totalorder %s31, 0
        %p401 = pnand %p399, %p400
        %p402 = pneg %p401
        // Predicated region
        $region73: #{net_forward.1} parent=47 // pred_check
          _
        $region74: #{net_forward.1} parent=47 // pred_check_branch
          %404 = sbr.rel (%p401) target = $region76
        $region75: #{net_forward.1} parent=47 // pred_region
          %v405 = vld [vmem:[#allocation4] sm:$0xff]
          %v406 = vld [vmem:[#allocation6] sm:$0xff]
          %v407 = vld [vmem:[#allocation6 + $0x8] sm:$0xff]
          %v408 = vld [vmem:[#allocation6 + $0x10] sm:$0xff]
          %v409 = vld [vmem:[#allocation6 + $0x18] sm:$0xff]
          %v410 = vld [vmem:[#allocation6 + $0x20] sm:$0xff]
          %v411 = vld [vmem:[#allocation6 + $0x28] sm:$0xff]
          %v412 = vld [vmem:[#allocation6 + $0x30] sm:$0xff]
          %v413 = vld [vmem:[#allocation6 + $0x38] sm:$0xff]
          %v414 = vld [vmem:[#allocation6 + $0x40] sm:$0xff]
          %v415 = vld [vmem:[#allocation6 + $0x48] sm:$0xff]
          %v416 = vld [vmem:[#allocation6 + $0x50] sm:$0xff]
          %v417 = vld [vmem:[#allocation6 + $0x58] sm:$0xff]
          %v418 = vld [vmem:[#allocation6 + $0x60] sm:$0xff]
          %v419 = vld [vmem:[#allocation6 + $0x68] sm:$0xff]
          %v420 = vld [vmem:[#allocation6 + $0x70] sm:$0xff]
          %v421 = vld [vmem:[#allocation6 + $0x78] sm:$0xff]
          %v422 = vld [vmem:[#allocation6 + $0x80] sm:$0xff]
          %v423 = vld [vmem:[#allocation6 + $0x88] sm:$0xff]
          %v424 = vld [vmem:[#allocation6 + $0x90] sm:$0xff]
          %v425 = vld [vmem:[#allocation6 + $0x98] sm:$0xff]
          %v426 = vld [vmem:[#allocation6 + $0xa0] sm:$0xff]
          %v427 = vld [vmem:[#allocation6 + $0xa8] sm:$0xff]
          %v428 = vld [vmem:[#allocation6 + $0xb0] sm:$0xff]
          %v429 = vld [vmem:[#allocation6 + $0xb8] sm:$0xff]
          %v430 = vld [vmem:[#allocation6 + $0xc0] sm:$0xff]
          %v431 = vld [vmem:[#allocation6 + $0xc8] sm:$0xff]
          %v432 = vld [vmem:[#allocation6 + $0xd0] sm:$0xff]
          %v433 = vld [vmem:[#allocation6 + $0xd8] sm:$0xff]
          %v434 = vld [vmem:[#allocation6 + $0xe0] sm:$0xff]
          %v435 = vld [vmem:[#allocation6 + $0xe8] sm:$0xff]
          %v436 = vld [vmem:[#allocation6 + $0xf0] sm:$0xff]
          %v437 = vld [vmem:[#allocation6 + $0xf8] sm:$0xff]
          %v438 = vld [vmem:[#allocation8] sm:$0xff]
          %v440 = vlaneseq
          %v441 = vshrl.u32 %v440, 7
          %v442 = vsub.s32 0, %v441
          %v443 = vrot.slane %v438, %v442
          %v444 = vlaneseq
          %v445 = vshrl.u32 %v444, 7
          %v446 = vsub.s32 1, %v445
          %v447 = vrot.slane %v438, %v446
          %v448 = vlaneseq
          %v449 = vshrl.u32 %v448, 7
          %v450 = vsub.s32 2, %v449
          %v451 = vrot.slane %v438, %v450
          %v452 = vlaneseq
          %v453 = vshrl.u32 %v452, 7
          %v454 = vsub.s32 3, %v453
          %v455 = vrot.slane %v438, %v454
          %v456 = vlaneseq
          %v457 = vshrl.u32 %v456, 7
          %v458 = vsub.s32 4, %v457
          %v459 = vrot.slane %v438, %v458
          %v460 = vlaneseq
          %v461 = vshrl.u32 %v460, 7
          %v462 = vsub.s32 5, %v461
          %v463 = vrot.slane %v438, %v462
          %v464 = vlaneseq
          %v465 = vshrl.u32 %v464, 7
          %v466 = vsub.s32 6, %v465
          %v467 = vrot.slane %v438, %v466
          %v468 = vlaneseq
          %v469 = vshrl.u32 %v468, 7
          %v470 = vsub.s32 7, %v469
          %v471 = vrot.slane %v438, %v470
          %vm480 = vcmask 261120
          %v482 = vsel %vm480, %v405, 0
          %484 = vmatprep.subr.mxu0 %v407
          %485 = vmatpush1.msra.mxu0 %v406
          %486 = vmatprep.subr.mxu0 %v415
          %487 = vmatpush1.msra.mxu0 %v414
          %488 = vmatprep.subr.mxu0 %v423
          %489 = vmatpush1.msra.mxu0 %v422
          %490 = vmatprep.subr.mxu0 %v431
          %491 = vmatpush1.msra.mxu0 %v430
          %492 = vmatprep.subr.mxu0 0.0
          %493 = vmatpush1.msra.mxu0 0.0
          %494 = vmatprep.subr.mxu0 0.0
          %495 = vmatpush1.msra.mxu0 0.0
          %496 = vmatprep.subr.mxu0 0.0
          %497 = vmatpush1.msra.mxu0 0.0
          %498 = vmatprep.subr.mxu0 0.0
          %499 = vmatpush1.msra.mxu0 0.0
          %500 = vmatprep.subr.mxu0 0.0
          %501 = vmatpush1.msra.mxu0 0.0
          %502 = vmatprep.subr.mxu0 0.0
          %503 = vmatpush1.msra.mxu0 0.0
          %504 = vmatprep.subr.mxu0 0.0
          %505 = vmatpush1.msra.mxu0 0.0
          %506 = vmatprep.subr.mxu0 0.0
          %507 = vmatpush1.msra.mxu0 0.0
          %508 = vmatprep.subr.mxu0 0.0
          %509 = vmatpush1.msra.mxu0 0.0
          %510 = vmatprep.subr.mxu0 0.0
          %511 = vmatpush1.msra.mxu0 0.0
          %512 = vmatprep.subr.mxu0 0.0
          %513 = vmatpush1.msra.mxu0 0.0
          %514 = vmatprep.subr.mxu0 0.0
          %515 = vmatpush1.msra.mxu0 0.0
          %516 = vmatprep.subr.mxu0 0.0
          %517 = vmatpush1.msra.mxu0 0.0
          %518 = vmatprep.subr.mxu0 0.0
          %519 = vmatpush1.msra.mxu0 0.0
          %520 = vmatprep.subr.mxu0 0.0
          %521 = vmatpush1.msra.mxu0 0.0
          %522 = vmatprep.subr.mxu0 0.0
          %523 = vmatpush1.msra.mxu0 0.0
          %524 = vmatprep.subr.mxu0 0.0
          %525 = vmatpush1.msra.mxu0 0.0
          %526 = vmatprep.subr.mxu0 0.0
          %527 = vmatpush1.msra.mxu0 0.0
          %528 = vmatprep.subr.mxu0 0.0
          %529 = vmatpush1.msra.mxu0 0.0
          %530 = vmatprep.subr.mxu0 0.0
          %531 = vmatpush1.msra.mxu0 0.0
          %532 = vmatprep.subr.mxu0 0.0
          %533 = vmatpush1.msra.mxu0 0.0
          %534 = vmatprep.subr.mxu0 0.0
          %535 = vmatpush1.msra.mxu0 0.0
          %536 = vmatprep.subr.mxu0 0.0
          %537 = vmatpush1.msra.mxu0 0.0
          %538 = vmatprep.subr.mxu0 0.0
          %539 = vmatpush1.msra.mxu0 0.0
          %540 = vmatprep.subr.mxu0 0.0
          %541 = vmatpush1.msra.mxu0 0.0
          %542 = vmatprep.subr.mxu0 0.0
          %543 = vmatpush1.msra.mxu0 0.0
          %544 = vmatprep.subr.mxu0 0.0
          %545 = vmatpush1.msra.mxu0 0.0
          %546 = vmatprep.subr.mxu0 0.0
          %547 = vmatpush1.msra.mxu0 0.0
          %548 = vmatprep.mubr.f32.mxu0 0.0
          %549 = vmatmul.mubr.f32.gmra.mrb[0].mxu0 %v482
          %v550 = vpop.f32.mrb[0].mxu0
          %v551 = vadd.f32 %v443, %v550
          %v552 = vpop.f32.mrb[0].mxu0
          %v553 = vadd.f32 %v447, %v552
          %554 = vdwg.mxu0
          %555 = vmatprep.subr.mxu0 %v409
          %556 = vmatpush1.msra.mxu0 %v408
          %557 = vmatprep.subr.mxu0 %v417
          %558 = vmatpush1.msra.mxu0 %v416
          %559 = vmatprep.subr.mxu0 %v425
          %560 = vmatpush1.msra.mxu0 %v424
          %561 = vmatprep.subr.mxu0 %v433
          %562 = vmatpush1.msra.mxu0 %v432
          %563 = vmatprep.subr.mxu0 0.0
          %564 = vmatpush1.msra.mxu0 0.0
          %565 = vmatprep.subr.mxu0 0.0
          %566 = vmatpush1.msra.mxu0 0.0
          %567 = vmatprep.subr.mxu0 0.0
          %568 = vmatpush1.msra.mxu0 0.0
          %569 = vmatprep.subr.mxu0 0.0
          %570 = vmatpush1.msra.mxu0 0.0
          %571 = vmatprep.subr.mxu0 0.0
          %572 = vmatpush1.msra.mxu0 0.0
          %573 = vmatprep.subr.mxu0 0.0
          %574 = vmatpush1.msra.mxu0 0.0
          %575 = vmatprep.subr.mxu0 0.0
          %576 = vmatpush1.msra.mxu0 0.0
          %577 = vmatprep.subr.mxu0 0.0
          %578 = vmatpush1.msra.mxu0 0.0
          %579 = vmatprep.subr.mxu0 0.0
          %580 = vmatpush1.msra.mxu0 0.0
          %581 = vmatprep.subr.mxu0 0.0
          %582 = vmatpush1.msra.mxu0 0.0
          %583 = vmatprep.subr.mxu0 0.0
          %584 = vmatpush1.msra.mxu0 0.0
          %585 = vmatprep.subr.mxu0 0.0
          %586 = vmatpush1.msra.mxu0 0.0
          %587 = vmatprep.subr.mxu0 0.0
          %588 = vmatpush1.msra.mxu0 0.0
          %589 = vmatprep.subr.mxu0 0.0
          %590 = vmatpush1.msra.mxu0 0.0
          %591 = vmatprep.subr.mxu0 0.0
          %592 = vmatpush1.msra.mxu0 0.0
          %593 = vmatprep.subr.mxu0 0.0
          %594 = vmatpush1.msra.mxu0 0.0
          %595 = vmatprep.subr.mxu0 0.0
          %596 = vmatpush1.msra.mxu0 0.0
          %597 = vmatprep.subr.mxu0 0.0
          %598 = vmatpush1.msra.mxu0 0.0
          %599 = vmatprep.subr.mxu0 0.0
          %600 = vmatpush1.msra.mxu0 0.0
          %601 = vmatprep.subr.mxu0 0.0
          %602 = vmatpush1.msra.mxu0 0.0
          %603 = vmatprep.subr.mxu0 0.0
          %604 = vmatpush1.msra.mxu0 0.0
          %605 = vmatprep.subr.mxu0 0.0
          %606 = vmatpush1.msra.mxu0 0.0
          %607 = vmatprep.subr.mxu0 0.0
          %608 = vmatpush1.msra.mxu0 0.0
          %609 = vmatprep.subr.mxu0 0.0
          %610 = vmatpush1.msra.mxu0 0.0
          %611 = vmatprep.subr.mxu0 0.0
          %612 = vmatpush1.msra.mxu0 0.0
          %613 = vmatprep.subr.mxu0 0.0
          %614 = vmatpush1.msra.mxu0 0.0
          %615 = vmatprep.subr.mxu0 0.0
          %616 = vmatpush1.msra.mxu0 0.0
          %617 = vmatprep.subr.mxu0 0.0
          %618 = vmatpush1.msra.mxu0 0.0
          %619 = vmatprep.mubr.f32.mxu0 0.0
          %620 = vmatmul.mubr.f32.gmra.mrb[0].mxu0 %v482
          %v621 = vpop.f32.mrb[0].mxu0
          %v622 = vadd.f32 %v451, %v621
          %v623 = vpop.f32.mrb[0].mxu0
          %v624 = vadd.f32 %v455, %v623
          %625 = vdwg.mxu0
          %626 = vmatprep.subr.mxu0 %v411
          %627 = vmatpush1.msra.mxu0 %v410
          %628 = vmatprep.subr.mxu0 %v419
          %629 = vmatpush1.msra.mxu0 %v418
          %630 = vmatprep.subr.mxu0 %v427
          %631 = vmatpush1.msra.mxu0 %v426
          %632 = vmatprep.subr.mxu0 %v435
          %633 = vmatpush1.msra.mxu0 %v434
          %634 = vmatprep.subr.mxu0 0.0
          %635 = vmatpush1.msra.mxu0 0.0
          %636 = vmatprep.subr.mxu0 0.0
          %637 = vmatpush1.msra.mxu0 0.0
          %638 = vmatprep.subr.mxu0 0.0
          %639 = vmatpush1.msra.mxu0 0.0
          %640 = vmatprep.subr.mxu0 0.0
          %641 = vmatpush1.msra.mxu0 0.0
          %642 = vmatprep.subr.mxu0 0.0
          %643 = vmatpush1.msra.mxu0 0.0
          %644 = vmatprep.subr.mxu0 0.0
          %645 = vmatpush1.msra.mxu0 0.0
          %646 = vmatprep.subr.mxu0 0.0
          %647 = vmatpush1.msra.mxu0 0.0
          %648 = vmatprep.subr.mxu0 0.0
          %649 = vmatpush1.msra.mxu0 0.0
          %650 = vmatprep.subr.mxu0 0.0
          %651 = vmatpush1.msra.mxu0 0.0
          %652 = vmatprep.subr.mxu0 0.0
          %653 = vmatpush1.msra.mxu0 0.0
          %654 = vmatprep.subr.mxu0 0.0
          %655 = vmatpush1.msra.mxu0 0.0
          %656 = vmatprep.subr.mxu0 0.0
          %657 = vmatpush1.msra.mxu0 0.0
          %658 = vmatprep.subr.mxu0 0.0
          %659 = vmatpush1.msra.mxu0 0.0
          %660 = vmatprep.subr.mxu0 0.0
          %661 = vmatpush1.msra.mxu0 0.0
          %662 = vmatprep.subr.mxu0 0.0
          %663 = vmatpush1.msra.mxu0 0.0
          %664 = vmatprep.subr.mxu0 0.0
          %665 = vmatpush1.msra.mxu0 0.0
          %666 = vmatprep.subr.mxu0 0.0
          %667 = vmatpush1.msra.mxu0 0.0
          %668 = vmatprep.subr.mxu0 0.0
          %669 = vmatpush1.msra.mxu0 0.0
          %670 = vmatprep.subr.mxu0 0.0
          %671 = vmatpush1.msra.mxu0 0.0
          %672 = vmatprep.subr.mxu0 0.0
          %673 = vmatpush1.msra.mxu0 0.0
          %674 = vmatprep.subr.mxu0 0.0
          %675 = vmatpush1.msra.mxu0 0.0
          %676 = vmatprep.subr.mxu0 0.0
          %677 = vmatpush1.msra.mxu0 0.0
          %678 = vmatprep.subr.mxu0 0.0
          %679 = vmatpush1.msra.mxu0 0.0
          %680 = vmatprep.subr.mxu0 0.0
          %681 = vmatpush1.msra.mxu0 0.0
          %682 = vmatprep.subr.mxu0 0.0
          %683 = vmatpush1.msra.mxu0 0.0
          %684 = vmatprep.subr.mxu0 0.0
          %685 = vmatpush1.msra.mxu0 0.0
          %686 = vmatprep.subr.mxu0 0.0
          %687 = vmatpush1.msra.mxu0 0.0
          %688 = vmatprep.subr.mxu0 0.0
          %689 = vmatpush1.msra.mxu0 0.0
          %690 = vmatprep.mubr.f32.mxu0 0.0
          %691 = vmatmul.mubr.f32.gmra.mrb[0].mxu0 %v482
          %v692 = vpop.f32.mrb[0].mxu0
          %v693 = vadd.f32 %v459, %v692
          %v694 = vpop.f32.mrb[0].mxu0
          %v695 = vadd.f32 %v463, %v694
          %696 = vdwg.mxu0
          %697 = vmatprep.subr.mxu0 %v413
          %698 = vmatpush1.msra.mxu0 %v412
          %699 = vmatprep.subr.mxu0 %v421
          %700 = vmatpush1.msra.mxu0 %v420
          %701 = vmatprep.subr.mxu0 %v429
          %702 = vmatpush1.msra.mxu0 %v428
          %703 = vmatprep.subr.mxu0 %v437
          %704 = vmatpush1.msra.mxu0 %v436
          %705 = vmatprep.subr.mxu0 0.0
          %706 = vmatpush1.msra.mxu0 0.0
          %707 = vmatprep.subr.mxu0 0.0
          %708 = vmatpush1.msra.mxu0 0.0
          %709 = vmatprep.subr.mxu0 0.0
          %710 = vmatpush1.msra.mxu0 0.0
          %711 = vmatprep.subr.mxu0 0.0
          %712 = vmatpush1.msra.mxu0 0.0
          %713 = vmatprep.subr.mxu0 0.0
          %714 = vmatpush1.msra.mxu0 0.0
          %715 = vmatprep.subr.mxu0 0.0
          %716 = vmatpush1.msra.mxu0 0.0
          %717 = vmatprep.subr.mxu0 0.0
          %718 = vmatpush1.msra.mxu0 0.0
          %719 = vmatprep.subr.mxu0 0.0
          %720 = vmatpush1.msra.mxu0 0.0
          %721 = vmatprep.subr.mxu0 0.0
          %722 = vmatpush1.msra.mxu0 0.0
          %723 = vmatprep.subr.mxu0 0.0
          %724 = vmatpush1.msra.mxu0 0.0
          %725 = vmatprep.subr.mxu0 0.0
          %726 = vmatpush1.msra.mxu0 0.0
          %727 = vmatprep.subr.mxu0 0.0
          %728 = vmatpush1.msra.mxu0 0.0
          %729 = vmatprep.subr.mxu0 0.0
          %730 = vmatpush1.msra.mxu0 0.0
          %731 = vmatprep.subr.mxu0 0.0
          %732 = vmatpush1.msra.mxu0 0.0
          %733 = vmatprep.subr.mxu0 0.0
          %734 = vmatpush1.msra.mxu0 0.0
          %735 = vmatprep.subr.mxu0 0.0
          %736 = vmatpush1.msra.mxu0 0.0
          %737 = vmatprep.subr.mxu0 0.0
          %738 = vmatpush1.msra.mxu0 0.0
          %739 = vmatprep.subr.mxu0 0.0
          %740 = vmatpush1.msra.mxu0 0.0
          %741 = vmatprep.subr.mxu0 0.0
          %742 = vmatpush1.msra.mxu0 0.0
          %743 = vmatprep.subr.mxu0 0.0
          %744 = vmatpush1.msra.mxu0 0.0
          %745 = vmatprep.subr.mxu0 0.0
          %746 = vmatpush1.msra.mxu0 0.0
          %747 = vmatprep.subr.mxu0 0.0
          %748 = vmatpush1.msra.mxu0 0.0
          %749 = vmatprep.subr.mxu0 0.0
          %750 = vmatpush1.msra.mxu0 0.0
          %751 = vmatprep.subr.mxu0 0.0
          %752 = vmatpush1.msra.mxu0 0.0
          %753 = vmatprep.subr.mxu0 0.0
          %754 = vmatpush1.msra.mxu0 0.0
          %755 = vmatprep.subr.mxu0 0.0
          %756 = vmatpush1.msra.mxu0 0.0
          %757 = vmatprep.subr.mxu0 0.0
          %758 = vmatpush1.msra.mxu0 0.0
          %759 = vmatprep.subr.mxu0 0.0
          %760 = vmatpush1.msra.mxu0 0.0
          %761 = vmatprep.mubr.f32.mxu0 0.0
          %762 = vmatmul.mubr.f32.gmra.mrb[0].mxu0 %v482
          %v763 = vpop.f32.mrb[0].mxu0
          %v764 = vadd.f32 %v467, %v763
          %v765 = vpop.f32.mrb[0].mxu0
          %v766 = vadd.f32 %v471, %v765
          %767 = vdwg.mxu0
          %v768 = vmax.f32 %v551, 0.0
          %v769 = vmax.f32 %v553, 0.0
          %v770 = vmax.f32 %v622, 0.0
          %v771 = vmax.f32 %v624, 0.0
          %v772 = vmax.f32 %v693, 0.0
          %v773 = vmax.f32 %v695, 0.0
          %v774 = vmax.f32 %v764, 0.0
          %v775 = vmax.f32 %v766, 0.0
          %776 = vst [vmem:[#allocation2] sm:$0xff] %v768
          %777 = vst [vmem:[#allocation2 + $0x8] sm:$0xff] %v769
          %778 = vst [vmem:[#allocation2 + $0x10] sm:$0xff] %v770
          %779 = vst [vmem:[#allocation2 + $0x18] sm:$0xff] %v771
          %780 = vst [vmem:[#allocation2 + $0x20] sm:$0xff] %v772
          %781 = vst [vmem:[#allocation2 + $0x28] sm:$0xff] %v773
          %782 = vst [vmem:[#allocation2 + $0x30] sm:$0xff] %v774
          %783 = vst [vmem:[#allocation2 + $0x38] sm:$0xff] %v775
        $region76: #{net_forward.1} parent=47 // pred_fallthru
          _
        %v784 = vld [vmem:[%s350] sm:$0xff]
        %v785 = vld [vmem:[%s350 + $0x8] sm:$0xff]
        %v786 = vld [vmem:[%s350 + $0x10] sm:$0xff]
        %v787 = vld [vmem:[%s350 + $0x18] sm:$0xff]
        %v788 = vld [vmem:[%s350 + $0x20] sm:$0xff]
        %v789 = vld [vmem:[%s350 + $0x28] sm:$0xff]
        %v790 = vld [vmem:[%s350 + $0x30] sm:$0xff]
        %v791 = vld [vmem:[%s350 + $0x38] sm:$0xff]
        %v792 = vld [vmem:[%s350 + $0x40] sm:$0xff]
        %v793 = vld [vmem:[%s350 + $0x48] sm:$0xff]
        %v794 = vld [vmem:[%s350 + $0x50] sm:$0xff]
        %v795 = vld [vmem:[%s350 + $0x58] sm:$0xff]
        %v796 = vld [vmem:[%s350 + $0x60] sm:$0xff]
        %v797 = vld [vmem:[%s350 + $0x68] sm:$0xff]
        %v798 = vld [vmem:[%s350 + $0x70] sm:$0xff]
        %v799 = vld [vmem:[%s350 + $0x78] sm:$0xff]
        %v800 = vld [vmem:[%s350 + $0x80] sm:$0xff]
        %v801 = vld [vmem:[%s350 + $0x88] sm:$0xff]
        %v802 = vld [vmem:[%s350 + $0x90] sm:$0xff]
        %v803 = vld [vmem:[%s350 + $0x98] sm:$0xff]
        %v804 = vld [vmem:[%s350 + $0xa0] sm:$0xff]
        %v805 = vld [vmem:[%s350 + $0xa8] sm:$0xff]
        %v806 = vld [vmem:[%s350 + $0xb0] sm:$0xff]
        %v807 = vld [vmem:[%s350 + $0xb8] sm:$0xff]
        %v808 = vld [vmem:[%s350 + $0xc0] sm:$0xff]
        %v809 = vld [vmem:[%s350 + $0xc8] sm:$0xff]
        %v810 = vld [vmem:[%s350 + $0xd0] sm:$0xff]
        %v811 = vld [vmem:[%s350 + $0xd8] sm:$0xff]
        %v812 = vld [vmem:[%s350 + $0xe0] sm:$0xff]
        %v813 = vld [vmem:[%s350 + $0xe8] sm:$0xff]
        %v814 = vld [vmem:[%s350 + $0xf0] sm:$0xff]
        %v815 = vld [vmem:[%s350 + $0xf8] sm:$0xff]
        %v816 = vld [vmem:[%s350 + $0x100] sm:$0xff]
        %v817 = vld [vmem:[%s350 + $0x108] sm:$0xff]
        %v818 = vld [vmem:[%s350 + $0x110] sm:$0xff]
        %v819 = vld [vmem:[%s350 + $0x118] sm:$0xff]
        %v820 = vld [vmem:[%s350 + $0x120] sm:$0xff]
        %v821 = vld [vmem:[%s350 + $0x128] sm:$0xff]
        %v822 = vld [vmem:[%s350 + $0x130] sm:$0xff]
        %v823 = vld [vmem:[%s350 + $0x138] sm:$0xff]
        %v824 = vld [vmem:[%s350 + $0x140] sm:$0xff]
        %v825 = vld [vmem:[%s350 + $0x148] sm:$0xff]
        %v826 = vld [vmem:[%s350 + $0x150] sm:$0xff]
        %v827 = vld [vmem:[%s350 + $0x158] sm:$0xff]
        %v828 = vld [vmem:[%s350 + $0x160] sm:$0xff]
        %v829 = vld [vmem:[%s350 + $0x168] sm:$0xff]
        %v830 = vld [vmem:[%s350 + $0x170] sm:$0xff]
        %v831 = vld [vmem:[%s350 + $0x178] sm:$0xff]
        %v832 = vld [vmem:[%s350 + $0x180] sm:$0xff]
        %v833 = vld [vmem:[%s350 + $0x188] sm:$0xff]
        %v834 = vld [vmem:[%s350 + $0x190] sm:$0xff]
        %v835 = vld [vmem:[%s350 + $0x198] sm:$0xff]
        %v836 = vld [vmem:[%s350 + $0x1a0] sm:$0xff]
        %v837 = vld [vmem:[%s350 + $0x1a8] sm:$0xff]
        %v838 = vld [vmem:[%s350 + $0x1b0] sm:$0xff]
        %v839 = vld [vmem:[%s350 + $0x1b8] sm:$0xff]
        %v840 = vld [vmem:[%s350 + $0x1c0] sm:$0xff]
        %v841 = vld [vmem:[%s350 + $0x1c8] sm:$0xff]
        %v842 = vld [vmem:[%s350 + $0x1d0] sm:$0xff]
        %v843 = vld [vmem:[%s350 + $0x1d8] sm:$0xff]
        %v844 = vld [vmem:[%s350 + $0x1e0] sm:$0xff]
        %v845 = vld [vmem:[%s350 + $0x1e8] sm:$0xff]
        %v846 = vld [vmem:[%s350 + $0x1f0] sm:$0xff]
        %v847 = vld [vmem:[%s350 + $0x1f8] sm:$0xff]
        %v848 = vld [vmem:[%s350 + $0x200] sm:$0xff]
        %v849 = vld [vmem:[%s350 + $0x208] sm:$0xff]
        %v850 = vld [vmem:[%s350 + $0x210] sm:$0xff]
        %v851 = vld [vmem:[%s350 + $0x218] sm:$0xff]
        %v852 = vld [vmem:[%s350 + $0x220] sm:$0xff]
        %v853 = vld [vmem:[%s350 + $0x228] sm:$0xff]
        %v854 = vld [vmem:[%s350 + $0x230] sm:$0xff]
        %v855 = vld [vmem:[%s350 + $0x238] sm:$0xff]
        %v856 = vld [vmem:[%s350 + $0x240] sm:$0xff]
        %v857 = vld [vmem:[%s350 + $0x248] sm:$0xff]
        %v858 = vld [vmem:[%s350 + $0x250] sm:$0xff]
        %v859 = vld [vmem:[%s350 + $0x258] sm:$0xff]
        %v860 = vld [vmem:[%s350 + $0x260] sm:$0xff]
        %v861 = vld [vmem:[%s350 + $0x268] sm:$0xff]
        %v862 = vld [vmem:[%s350 + $0x270] sm:$0xff]
        %v863 = vld [vmem:[%s350 + $0x278] sm:$0xff]
        %v864 = vld [vmem:[%s350 + $0x280] sm:$0xff]
        %v865 = vld [vmem:[%s350 + $0x288] sm:$0xff]
        %v866 = vld [vmem:[%s350 + $0x290] sm:$0xff]
        %v867 = vld [vmem:[%s350 + $0x298] sm:$0xff]
        %v868 = vld [vmem:[%s350 + $0x2a0] sm:$0xff]
        %v869 = vld [vmem:[%s350 + $0x2a8] sm:$0xff]
        %v870 = vld [vmem:[%s350 + $0x2b0] sm:$0xff]
        %v871 = vld [vmem:[%s350 + $0x2b8] sm:$0xff]
        %v872 = vld [vmem:[%s350 + $0x2c0] sm:$0xff]
        %v873 = vld [vmem:[%s350 + $0x2c8] sm:$0xff]
        %v874 = vld [vmem:[%s350 + $0x2d0] sm:$0xff]
        %v875 = vld [vmem:[%s350 + $0x2d8] sm:$0xff]
        %v876 = vld [vmem:[%s350 + $0x2e0] sm:$0xff]
        %v877 = vld [vmem:[%s350 + $0x2e8] sm:$0xff]
        %v878 = vld [vmem:[%s350 + $0x2f0] sm:$0xff]
        %v879 = vld [vmem:[%s350 + $0x2f8] sm:$0xff]
        %v880 = vld [vmem:[%s350 + $0x300] sm:$0xff]
        %v881 = vld [vmem:[%s350 + $0x308] sm:$0xff]
        %v882 = vld [vmem:[%s350 + $0x310] sm:$0xff]
        %v883 = vld [vmem:[%s350 + $0x318] sm:$0xff]
        %v884 = vld [vmem:[%s350 + $0x320] sm:$0xff]
        %v885 = vld [vmem:[%s350 + $0x328] sm:$0xff]
        %v886 = vld [vmem:[%s350 + $0x330] sm:$0xff]
        %v887 = vld [vmem:[%s350 + $0x338] sm:$0xff]
        %v888 = vld [vmem:[%s350 + $0x340] sm:$0xff]
        %v889 = vld [vmem:[%s350 + $0x348] sm:$0xff]
        %v890 = vld [vmem:[%s350 + $0x350] sm:$0xff]
        %v891 = vld [vmem:[%s350 + $0x358] sm:$0xff]
        %v892 = vld [vmem:[%s350 + $0x360] sm:$0xff]
        %v893 = vld [vmem:[%s350 + $0x368] sm:$0xff]
        %v894 = vld [vmem:[%s350 + $0x370] sm:$0xff]
        %v895 = vld [vmem:[%s350 + $0x378] sm:$0xff]
        %v896 = vld [vmem:[%s350 + $0x380] sm:$0xff]
        %v897 = vld [vmem:[%s350 + $0x388] sm:$0xff]
        %v898 = vld [vmem:[%s350 + $0x390] sm:$0xff]
        %v899 = vld [vmem:[%s350 + $0x398] sm:$0xff]
        %v900 = vld [vmem:[%s350 + $0x3a0] sm:$0xff]
        %v901 = vld [vmem:[%s350 + $0x3a8] sm:$0xff]
        %v902 = vld [vmem:[%s350 + $0x3b0] sm:$0xff]
        %v903 = vld [vmem:[%s350 + $0x3b8] sm:$0xff]
        %v904 = vld [vmem:[%s350 + $0x3c0] sm:$0xff]
        %v905 = vld [vmem:[%s350 + $0x3c8] sm:$0xff]
        %v906 = vld [vmem:[%s350 + $0x3d0] sm:$0xff]
        %v907 = vld [vmem:[%s350 + $0x3d8] sm:$0xff]
        %v908 = vld [vmem:[%s350 + $0x3e0] sm:$0xff]
        %v909 = vld [vmem:[%s350 + $0x3e8] sm:$0xff]
        %v910 = vld [vmem:[%s350 + $0x3f0] sm:$0xff]
        %v911 = vld [vmem:[%s350 + $0x3f8] sm:$0xff]
        %v912 = vld [vmem:[%s350 + $0x400] sm:$0xff]
        %v913 = vld [vmem:[%s350 + $0x408] sm:$0xff]
        %v914 = vld [vmem:[%s350 + $0x410] sm:$0xff]
        %v915 = vld [vmem:[%s350 + $0x418] sm:$0xff]
        %v916 = vld [vmem:[%s350 + $0x420] sm:$0xff]
        %v917 = vld [vmem:[%s350 + $0x428] sm:$0xff]
        %v918 = vld [vmem:[%s350 + $0x430] sm:$0xff]
        %v919 = vld [vmem:[%s350 + $0x438] sm:$0xff]
        %v920 = vld [vmem:[%s350 + $0x440] sm:$0xff]
        %v921 = vld [vmem:[%s350 + $0x448] sm:$0xff]
        %v922 = vld [vmem:[%s350 + $0x450] sm:$0xff]
        %v923 = vld [vmem:[%s350 + $0x458] sm:$0xff]
        %v924 = vld [vmem:[%s350 + $0x460] sm:$0xff]
        %v925 = vld [vmem:[%s350 + $0x468] sm:$0xff]
        %v926 = vld [vmem:[%s350 + $0x470] sm:$0xff]
        %v927 = vld [vmem:[%s350 + $0x478] sm:$0xff]
        %v928 = vld [vmem:[%s350 + $0x480] sm:$0xff]
        %v929 = vld [vmem:[%s350 + $0x488] sm:$0xff]
        %v930 = vld [vmem:[%s350 + $0x490] sm:$0xff]
        %v931 = vld [vmem:[%s350 + $0x498] sm:$0xff]
        %v932 = vld [vmem:[%s350 + $0x4a0] sm:$0xff]
        %v933 = vld [vmem:[%s350 + $0x4a8] sm:$0xff]
        %v934 = vld [vmem:[%s350 + $0x4b0] sm:$0xff]
        %v935 = vld [vmem:[%s350 + $0x4b8] sm:$0xff]
        %v936 = vld [vmem:[%s350 + $0x4c0] sm:$0xff]
        %v937 = vld [vmem:[%s350 + $0x4c8] sm:$0xff]
        %v938 = vld [vmem:[%s350 + $0x4d0] sm:$0xff]
        %v939 = vld [vmem:[%s350 + $0x4d8] sm:$0xff]
        %v940 = vld [vmem:[%s350 + $0x4e0] sm:$0xff]
        %v941 = vld [vmem:[%s350 + $0x4e8] sm:$0xff]
        %v942 = vld [vmem:[%s350 + $0x4f0] sm:$0xff]
        %v943 = vld [vmem:[%s350 + $0x4f8] sm:$0xff]
        %v944 = vld [vmem:[%s350 + $0x500] sm:$0xff]
        %v945 = vld [vmem:[%s350 + $0x508] sm:$0xff]
        %v946 = vld [vmem:[%s350 + $0x510] sm:$0xff]
        %v947 = vld [vmem:[%s350 + $0x518] sm:$0xff]
        %v948 = vld [vmem:[%s350 + $0x520] sm:$0xff]
        %v949 = vld [vmem:[%s350 + $0x528] sm:$0xff]
        %v950 = vld [vmem:[%s350 + $0x530] sm:$0xff]
        %v951 = vld [vmem:[%s350 + $0x538] sm:$0xff]
        %v952 = vld [vmem:[%s350 + $0x540] sm:$0xff]
        %v953 = vld [vmem:[%s350 + $0x548] sm:$0xff]
        %v954 = vld [vmem:[%s350 + $0x550] sm:$0xff]
        %v955 = vld [vmem:[%s350 + $0x558] sm:$0xff]
        %v956 = vld [vmem:[%s350 + $0x560] sm:$0xff]
        %v957 = vld [vmem:[%s350 + $0x568] sm:$0xff]
        %v958 = vld [vmem:[%s350 + $0x570] sm:$0xff]
        %v959 = vld [vmem:[%s350 + $0x578] sm:$0xff]
        %v960 = vld [vmem:[%s350 + $0x580] sm:$0xff]
        %v961 = vld [vmem:[%s350 + $0x588] sm:$0xff]
        %v962 = vld [vmem:[%s350 + $0x590] sm:$0xff]
        %v963 = vld [vmem:[%s350 + $0x598] sm:$0xff]
        %v964 = vld [vmem:[%s350 + $0x5a0] sm:$0xff]
        %v965 = vld [vmem:[%s350 + $0x5a8] sm:$0xff]
        %v966 = vld [vmem:[%s350 + $0x5b0] sm:$0xff]
        %v967 = vld [vmem:[%s350 + $0x5b8] sm:$0xff]
        %v968 = vld [vmem:[%s350 + $0x5c0] sm:$0xff]
        %v969 = vld [vmem:[%s350 + $0x5c8] sm:$0xff]
        %v970 = vld [vmem:[%s350 + $0x5d0] sm:$0xff]
        %v971 = vld [vmem:[%s350 + $0x5d8] sm:$0xff]
        %v972 = vld [vmem:[%s350 + $0x5e0] sm:$0xff]
        %v973 = vld [vmem:[%s350 + $0x5e8] sm:$0xff]
        %v974 = vld [vmem:[%s350 + $0x5f0] sm:$0xff]
        %v975 = vld [vmem:[%s350 + $0x5f8] sm:$0xff]
        %v976 = vld [vmem:[%s350 + $0x600] sm:$0xff]
        %v977 = vld [vmem:[%s350 + $0x608] sm:$0xff]
        %v978 = vld [vmem:[%s350 + $0x610] sm:$0xff]
        %v979 = vld [vmem:[%s350 + $0x618] sm:$0xff]
        %v980 = vld [vmem:[%s350 + $0x620] sm:$0xff]
        %v981 = vld [vmem:[%s350 + $0x628] sm:$0xff]
        %v982 = vld [vmem:[%s350 + $0x630] sm:$0xff]
        %v983 = vld [vmem:[%s350 + $0x638] sm:$0xff]
        %v984 = vld [vmem:[%s350 + $0x640] sm:$0xff]
        %v985 = vld [vmem:[%s350 + $0x648] sm:$0xff]
        %v986 = vld [vmem:[%s350 + $0x650] sm:$0xff]
        %v987 = vld [vmem:[%s350 + $0x658] sm:$0xff]
        %v988 = vld [vmem:[%s350 + $0x660] sm:$0xff]
        %v989 = vld [vmem:[%s350 + $0x668] sm:$0xff]
        %v990 = vld [vmem:[%s350 + $0x670] sm:$0xff]
        %v991 = vld [vmem:[%s350 + $0x678] sm:$0xff]
        %v992 = vld [vmem:[%s350 + $0x680] sm:$0xff]
        %v993 = vld [vmem:[%s350 + $0x688] sm:$0xff]
        %v994 = vld [vmem:[%s350 + $0x690] sm:$0xff]
        %v995 = vld [vmem:[%s350 + $0x698] sm:$0xff]
        %v996 = vld [vmem:[%s350 + $0x6a0] sm:$0xff]
        %v997 = vld [vmem:[%s350 + $0x6a8] sm:$0xff]
        %v998 = vld [vmem:[%s350 + $0x6b0] sm:$0xff]
        %v999 = vld [vmem:[%s350 + $0x6b8] sm:$0xff]
        %v1000 = vld [vmem:[%s350 + $0x6c0] sm:$0xff]
        %v1001 = vld [vmem:[%s350 + $0x6c8] sm:$0xff]
        %v1002 = vld [vmem:[%s350 + $0x6d0] sm:$0xff]
        %v1003 = vld [vmem:[%s350 + $0x6d8] sm:$0xff]
        %v1004 = vld [vmem:[%s350 + $0x6e0] sm:$0xff]
        %v1005 = vld [vmem:[%s350 + $0x6e8] sm:$0xff]
        %v1006 = vld [vmem:[%s350 + $0x6f0] sm:$0xff]
        %v1007 = vld [vmem:[%s350 + $0x6f8] sm:$0xff]
        %v1008 = vld [vmem:[%s350 + $0x700] sm:$0xff]
        %v1009 = vld [vmem:[%s350 + $0x708] sm:$0xff]
        %v1010 = vld [vmem:[%s350 + $0x710] sm:$0xff]
        %v1011 = vld [vmem:[%s350 + $0x718] sm:$0xff]
        %v1012 = vld [vmem:[%s350 + $0x720] sm:$0xff]
        %v1013 = vld [vmem:[%s350 + $0x728] sm:$0xff]
        %v1014 = vld [vmem:[%s350 + $0x730] sm:$0xff]
        %v1015 = vld [vmem:[%s350 + $0x738] sm:$0xff]
        %v1016 = vld [vmem:[%s350 + $0x740] sm:$0xff]
        %v1017 = vld [vmem:[%s350 + $0x748] sm:$0xff]
        %v1018 = vld [vmem:[%s350 + $0x750] sm:$0xff]
        %v1019 = vld [vmem:[%s350 + $0x758] sm:$0xff]
        %v1020 = vld [vmem:[%s350 + $0x760] sm:$0xff]
        %v1021 = vld [vmem:[%s350 + $0x768] sm:$0xff]
        %v1022 = vld [vmem:[%s350 + $0x770] sm:$0xff]
        %v1023 = vld [vmem:[%s350 + $0x778] sm:$0xff]
        %v1024 = vld [vmem:[%s350 + $0x780] sm:$0xff]
        %v1025 = vld [vmem:[%s350 + $0x788] sm:$0xff]
        %v1026 = vld [vmem:[%s350 + $0x790] sm:$0xff]
        %v1027 = vld [vmem:[%s350 + $0x798] sm:$0xff]
        %v1028 = vld [vmem:[%s350 + $0x7a0] sm:$0xff]
        %v1029 = vld [vmem:[%s350 + $0x7a8] sm:$0xff]
        %v1030 = vld [vmem:[%s350 + $0x7b0] sm:$0xff]
        %v1031 = vld [vmem:[%s350 + $0x7b8] sm:$0xff]
        %v1032 = vld [vmem:[%s350 + $0x7c0] sm:$0xff]
        %v1033 = vld [vmem:[%s350 + $0x7c8] sm:$0xff]
        %v1034 = vld [vmem:[%s350 + $0x7d0] sm:$0xff]
        %v1035 = vld [vmem:[%s350 + $0x7d8] sm:$0xff]
        %v1036 = vld [vmem:[%s350 + $0x7e0] sm:$0xff]
        %v1037 = vld [vmem:[%s350 + $0x7e8] sm:$0xff]
        %v1038 = vld [vmem:[%s350 + $0x7f0] sm:$0xff]
        %v1039 = vld [vmem:[%s350 + $0x7f8] sm:$0xff]
        %s1040 = smul.u32 %s396, 8
        %s1041 = smul.addr %s1040, 8
        %s1042 = scalar_lea.vmem [#allocation2], %s1041
        %v1043 = vld [vmem:[%s1042] sm:$0xff]
        %v1044 = vld [vmem:[%s1042 + $0x8] sm:$0xff]
        %v1045 = vld [vmem:[%s1042 + $0x10] sm:$0xff]
        %v1046 = vld [vmem:[%s1042 + $0x18] sm:$0xff]
        %v1047 = vld [vmem:[%s1042 + $0x20] sm:$0xff]
        %v1048 = vld [vmem:[%s1042 + $0x28] sm:$0xff]
        %v1049 = vld [vmem:[%s1042 + $0x30] sm:$0xff]
        %v1050 = vld [vmem:[%s1042 + $0x38] sm:$0xff]
        %v1051 = vld [vmem:[%s359] sm:$0x3]
        %v1053 = vlaneseq
        %v1054 = vshrl.u32 %v1053, 7
        %v1055 = vsub.s32 0, %v1054
        %v1056 = vrot.slane %v1051, %v1055
        %v1057 = vlaneseq
        %v1058 = vshrl.u32 %v1057, 7
        %v1059 = vsub.s32 1, %v1058
        %v1060 = vrot.slane %v1051, %v1059
        %1063 = vmatprep.subr.mxu0 %v785
        %1064 = vmatpush1.msra.mxu0 %v784
        %1065 = vmatprep.subr.mxu0 %v787
        %1066 = vmatpush1.msra.mxu0 %v786
        %1067 = vmatprep.subr.mxu0 %v789
        %1068 = vmatpush1.msra.mxu0 %v788
        %1069 = vmatprep.subr.mxu0 %v791
        %1070 = vmatpush1.msra.mxu0 %v790
        %1071 = vmatprep.subr.mxu0 %v793
        %1072 = vmatpush1.msra.mxu0 %v792
        %1073 = vmatprep.subr.mxu0 %v795
        %1074 = vmatpush1.msra.mxu0 %v794
        %1075 = vmatprep.subr.mxu0 %v797
        %1076 = vmatpush1.msra.mxu0 %v796
        %1077 = vmatprep.subr.mxu0 %v799
        %1078 = vmatpush1.msra.mxu0 %v798
        %1079 = vmatprep.subr.mxu0 %v801
        %1080 = vmatpush1.msra.mxu0 %v800
        %1081 = vmatprep.subr.mxu0 %v803
        %1082 = vmatpush1.msra.mxu0 %v802
        %1083 = vmatprep.subr.mxu0 %v805
        %1084 = vmatpush1.msra.mxu0 %v804
        %1085 = vmatprep.subr.mxu0 %v807
        %1086 = vmatpush1.msra.mxu0 %v806
        %1087 = vmatprep.subr.mxu0 %v809
        %1088 = vmatpush1.msra.mxu0 %v808
        %1089 = vmatprep.subr.mxu0 %v811
        %1090 = vmatpush1.msra.mxu0 %v810
        %1091 = vmatprep.subr.mxu0 %v813
        %1092 = vmatpush1.msra.mxu0 %v812
        %1093 = vmatprep.subr.mxu0 %v815
        %1094 = vmatpush1.msra.mxu0 %v814
        %1095 = vmatprep.subr.mxu0 %v817
        %1096 = vmatpush1.msra.mxu0 %v816
        %1097 = vmatprep.subr.mxu0 %v819
        %1098 = vmatpush1.msra.mxu0 %v818
        %1099 = vmatprep.subr.mxu0 %v821
        %1100 = vmatpush1.msra.mxu0 %v820
        %1101 = vmatprep.subr.mxu0 %v823
        %1102 = vmatpush1.msra.mxu0 %v822
        %1103 = vmatprep.subr.mxu0 %v825
        %1104 = vmatpush1.msra.mxu0 %v824
        %1105 = vmatprep.subr.mxu0 %v827
        %1106 = vmatpush1.msra.mxu0 %v826
        %1107 = vmatprep.subr.mxu0 %v829
        %1108 = vmatpush1.msra.mxu0 %v828
        %1109 = vmatprep.subr.mxu0 %v831
        %1110 = vmatpush1.msra.mxu0 %v830
        %1111 = vmatprep.subr.mxu0 %v833
        %1112 = vmatpush1.msra.mxu0 %v832
        %1113 = vmatprep.subr.mxu0 %v835
        %1114 = vmatpush1.msra.mxu0 %v834
        %1115 = vmatprep.subr.mxu0 %v837
        %1116 = vmatpush1.msra.mxu0 %v836
        %1117 = vmatprep.subr.mxu0 %v839
        %1118 = vmatpush1.msra.mxu0 %v838
        %1119 = vmatprep.subr.mxu0 %v841
        %1120 = vmatpush1.msra.mxu0 %v840
        %1121 = vmatprep.subr.mxu0 %v843
        %1122 = vmatpush1.msra.mxu0 %v842
        %1123 = vmatprep.subr.mxu0 %v845
        %1124 = vmatpush1.msra.mxu0 %v844
        %1125 = vmatprep.subr.mxu0 %v847
        %1126 = vmatpush1.msra.mxu0 %v846
        %1127 = vmatprep.mubr.f32.mxu0 %v1044
        %1128 = vmatmul.mubr.f32.gmra.mrb[0].mxu0 %v1043
        %v1129 = vpop.f32.mrb[0].mxu0
        %v1130 = vadd.f32 %v1056, %v1129
        %v1131 = vpop.f32.mrb[0].mxu0
        %v1132 = vadd.f32 %v1060, %v1131
        %1133 = vdwg.mxu0
        %1134 = vmatprep.subr.mxu0 %v849
        %1135 = vmatpush1.msra.mxu0 %v848
        %1136 = vmatprep.subr.mxu0 %v851
        %1137 = vmatpush1.msra.mxu0 %v850
        %1138 = vmatprep.subr.mxu0 %v853
        %1139 = vmatpush1.msra.mxu0 %v852
        %1140 = vmatprep.subr.mxu0 %v855
        %1141 = vmatpush1.msra.mxu0 %v854
        %1142 = vmatprep.subr.mxu0 %v857
        %1143 = vmatpush1.msra.mxu0 %v856
        %1144 = vmatprep.subr.mxu0 %v859
        %1145 = vmatpush1.msra.mxu0 %v858
        %1146 = vmatprep.subr.mxu0 %v861
        %1147 = vmatpush1.msra.mxu0 %v860
        %1148 = vmatprep.subr.mxu0 %v863
        %1149 = vmatpush1.msra.mxu0 %v862
        %1150 = vmatprep.subr.mxu0 %v865
        %1151 = vmatpush1.msra.mxu0 %v864
        %1152 = vmatprep.subr.mxu0 %v867
        %1153 = vmatpush1.msra.mxu0 %v866
        %1154 = vmatprep.subr.mxu0 %v869
        %1155 = vmatpush1.msra.mxu0 %v868
        %1156 = vmatprep.subr.mxu0 %v871
        %1157 = vmatpush1.msra.mxu0 %v870
        %1158 = vmatprep.subr.mxu0 %v873
        %1159 = vmatpush1.msra.mxu0 %v872
        %1160 = vmatprep.subr.mxu0 %v875
        %1161 = vmatpush1.msra.mxu0 %v874
        %1162 = vmatprep.subr.mxu0 %v877
        %1163 = vmatpush1.msra.mxu0 %v876
        %1164 = vmatprep.subr.mxu0 %v879
        %1165 = vmatpush1.msra.mxu0 %v878
        %1166 = vmatprep.subr.mxu0 %v881
        %1167 = vmatpush1.msra.mxu0 %v880
        %1168 = vmatprep.subr.mxu0 %v883
        %1169 = vmatpush1.msra.mxu0 %v882
        %1170 = vmatprep.subr.mxu0 %v885
        %1171 = vmatpush1.msra.mxu0 %v884
        %1172 = vmatprep.subr.mxu0 %v887
        %1173 = vmatpush1.msra.mxu0 %v886
        %1174 = vmatprep.subr.mxu0 %v889
        %1175 = vmatpush1.msra.mxu0 %v888
        %1176 = vmatprep.subr.mxu0 %v891
        %1177 = vmatpush1.msra.mxu0 %v890
        %1178 = vmatprep.subr.mxu0 %v893
        %1179 = vmatpush1.msra.mxu0 %v892
        %1180 = vmatprep.subr.mxu0 %v895
        %1181 = vmatpush1.msra.mxu0 %v894
        %1182 = vmatprep.subr.mxu0 %v897
        %1183 = vmatpush1.msra.mxu0 %v896
        %1184 = vmatprep.subr.mxu0 %v899
        %1185 = vmatpush1.msra.mxu0 %v898
        %1186 = vmatprep.subr.mxu0 %v901
        %1187 = vmatpush1.msra.mxu0 %v900
        %1188 = vmatprep.subr.mxu0 %v903
        %1189 = vmatpush1.msra.mxu0 %v902
        %1190 = vmatprep.subr.mxu0 %v905
        %1191 = vmatpush1.msra.mxu0 %v904
        %1192 = vmatprep.subr.mxu0 %v907
        %1193 = vmatpush1.msra.mxu0 %v906
        %1194 = vmatprep.subr.mxu0 %v909
        %1195 = vmatpush1.msra.mxu0 %v908
        %1196 = vmatprep.subr.mxu0 %v911
        %1197 = vmatpush1.msra.mxu0 %v910
        %1198 = vmatprep.mubr.f32.mxu0 %v1046
        %1199 = vmatmul.mubr.f32.gmra.mrb[0].mxu0 %v1045
        %v1200 = vpop.f32.mrb[0].mxu0
        %v1201 = vadd.f32 %v1130, %v1200
        %v1202 = vpop.f32.mrb[0].mxu0
        %v1203 = vadd.f32 %v1132, %v1202
        %1204 = vdwg.mxu0
        %1205 = vmatprep.subr.mxu0 %v913
        %1206 = vmatpush1.msra.mxu0 %v912
        %1207 = vmatprep.subr.mxu0 %v915
        %1208 = vmatpush1.msra.mxu0 %v914
        %1209 = vmatprep.subr.mxu0 %v917
        %1210 = vmatpush1.msra.mxu0 %v916
        %1211 = vmatprep.subr.mxu0 %v919
        %1212 = vmatpush1.msra.mxu0 %v918
        %1213 = vmatprep.subr.mxu0 %v921
        %1214 = vmatpush1.msra.mxu0 %v920
        %1215 = vmatprep.subr.mxu0 %v923
        %1216 = vmatpush1.msra.mxu0 %v922
        %1217 = vmatprep.subr.mxu0 %v925
        %1218 = vmatpush1.msra.mxu0 %v924
        %1219 = vmatprep.subr.mxu0 %v927
        %1220 = vmatpush1.msra.mxu0 %v926
        %1221 = vmatprep.subr.mxu0 %v929
        %1222 = vmatpush1.msra.mxu0 %v928
        %1223 = vmatprep.subr.mxu0 %v931
        %1224 = vmatpush1.msra.mxu0 %v930
        %1225 = vmatprep.subr.mxu0 %v933
        %1226 = vmatpush1.msra.mxu0 %v932
        %1227 = vmatprep.subr.mxu0 %v935
        %1228 = vmatpush1.msra.mxu0 %v934
        %1229 = vmatprep.subr.mxu0 %v937
        %1230 = vmatpush1.msra.mxu0 %v936
        %1231 = vmatprep.subr.mxu0 %v939
        %1232 = vmatpush1.msra.mxu0 %v938
        %1233 = vmatprep.subr.mxu0 %v941
        %1234 = vmatpush1.msra.mxu0 %v940
        %1235 = vmatprep.subr.mxu0 %v943
        %1236 = vmatpush1.msra.mxu0 %v942
        %1237 = vmatprep.subr.mxu0 %v945
        %1238 = vmatpush1.msra.mxu0 %v944
        %1239 = vmatprep.subr.mxu0 %v947
        %1240 = vmatpush1.msra.mxu0 %v946
        %1241 = vmatprep.subr.mxu0 %v949
        %1242 = vmatpush1.msra.mxu0 %v948
        %1243 = vmatprep.subr.mxu0 %v951
        %1244 = vmatpush1.msra.mxu0 %v950
        %1245 = vmatprep.subr.mxu0 %v953
        %1246 = vmatpush1.msra.mxu0 %v952
        %1247 = vmatprep.subr.mxu0 %v955
        %1248 = vmatpush1.msra.mxu0 %v954
        %1249 = vmatprep.subr.mxu0 %v957
        %1250 = vmatpush1.msra.mxu0 %v956
        %1251 = vmatprep.subr.mxu0 %v959
        %1252 = vmatpush1.msra.mxu0 %v958
        %1253 = vmatprep.subr.mxu0 %v961
        %1254 = vmatpush1.msra.mxu0 %v960
        %1255 = vmatprep.subr.mxu0 %v963
        %1256 = vmatpush1.msra.mxu0 %v962
        %1257 = vmatprep.subr.mxu0 %v965
        %1258 = vmatpush1.msra.mxu0 %v964
        %1259 = vmatprep.subr.mxu0 %v967
        %1260 = vmatpush1.msra.mxu0 %v966
        %1261 = vmatprep.subr.mxu0 %v969
        %1262 = vmatpush1.msra.mxu0 %v968
        %1263 = vmatprep.subr.mxu0 %v971
        %1264 = vmatpush1.msra.mxu0 %v970
        %1265 = vmatprep.subr.mxu0 %v973
        %1266 = vmatpush1.msra.mxu0 %v972
        %1267 = vmatprep.subr.mxu0 %v975
        %1268 = vmatpush1.msra.mxu0 %v974
        %1269 = vmatprep.mubr.f32.mxu0 %v1048
        %1270 = vmatmul.mubr.f32.gmra.mrb[0].mxu0 %v1047
        %v1271 = vpop.f32.mrb[0].mxu0
        %v1272 = vadd.f32 %v1201, %v1271
        %v1273 = vpop.f32.mrb[0].mxu0
        %v1274 = vadd.f32 %v1203, %v1273
        %1275 = vdwg.mxu0
        %1276 = vmatprep.subr.mxu0 %v977
        %1277 = vmatpush1.msra.mxu0 %v976
        %1278 = vmatprep.subr.mxu0 %v979
        %1279 = vmatpush1.msra.mxu0 %v978
        %1280 = vmatprep.subr.mxu0 %v981
        %1281 = vmatpush1.msra.mxu0 %v980
        %1282 = vmatprep.subr.mxu0 %v983
        %1283 = vmatpush1.msra.mxu0 %v982
        %1284 = vmatprep.subr.mxu0 %v985
        %1285 = vmatpush1.msra.mxu0 %v984
        %1286 = vmatprep.subr.mxu0 %v987
        %1287 = vmatpush1.msra.mxu0 %v986
        %1288 = vmatprep.subr.mxu0 %v989
        %1289 = vmatpush1.msra.mxu0 %v988
        %1290 = vmatprep.subr.mxu0 %v991
        %1291 = vmatpush1.msra.mxu0 %v990
        %1292 = vmatprep.subr.mxu0 %v993
        %1293 = vmatpush1.msra.mxu0 %v992
        %1294 = vmatprep.subr.mxu0 %v995
        %1295 = vmatpush1.msra.mxu0 %v994
        %1296 = vmatprep.subr.mxu0 %v997
        %1297 = vmatpush1.msra.mxu0 %v996
        %1298 = vmatprep.subr.mxu0 %v999
        %1299 = vmatpush1.msra.mxu0 %v998
        %1300 = vmatprep.subr.mxu0 %v1001
        %1301 = vmatpush1.msra.mxu0 %v1000
        %1302 = vmatprep.subr.mxu0 %v1003
        %1303 = vmatpush1.msra.mxu0 %v1002
        %1304 = vmatprep.subr.mxu0 %v1005
        %1305 = vmatpush1.msra.mxu0 %v1004
        %1306 = vmatprep.subr.mxu0 %v1007
        %1307 = vmatpush1.msra.mxu0 %v1006
        %1308 = vmatprep.subr.mxu0 %v1009
        %1309 = vmatpush1.msra.mxu0 %v1008
        %1310 = vmatprep.subr.mxu0 %v1011
        %1311 = vmatpush1.msra.mxu0 %v1010
        %1312 = vmatprep.subr.mxu0 %v1013
        %1313 = vmatpush1.msra.mxu0 %v1012
        %1314 = vmatprep.subr.mxu0 %v1015
        %1315 = vmatpush1.msra.mxu0 %v1014
        %1316 = vmatprep.subr.mxu0 %v1017
        %1317 = vmatpush1.msra.mxu0 %v1016
        %1318 = vmatprep.subr.mxu0 %v1019
        %1319 = vmatpush1.msra.mxu0 %v1018
        %1320 = vmatprep.subr.mxu0 %v1021
        %1321 = vmatpush1.msra.mxu0 %v1020
        %1322 = vmatprep.subr.mxu0 %v1023
        %1323 = vmatpush1.msra.mxu0 %v1022
        %1324 = vmatprep.subr.mxu0 %v1025
        %1325 = vmatpush1.msra.mxu0 %v1024
        %1326 = vmatprep.subr.mxu0 %v1027
        %1327 = vmatpush1.msra.mxu0 %v1026
        %1328 = vmatprep.subr.mxu0 %v1029
        %1329 = vmatpush1.msra.mxu0 %v1028
        %1330 = vmatprep.subr.mxu0 %v1031
        %1331 = vmatpush1.msra.mxu0 %v1030
        %1332 = vmatprep.subr.mxu0 %v1033
        %1333 = vmatpush1.msra.mxu0 %v1032
        %1334 = vmatprep.subr.mxu0 %v1035
        %1335 = vmatpush1.msra.mxu0 %v1034
        %1336 = vmatprep.subr.mxu0 %v1037
        %1337 = vmatpush1.msra.mxu0 %v1036
        %1338 = vmatprep.subr.mxu0 %v1039
        %1339 = vmatpush1.msra.mxu0 %v1038
        %1340 = vmatprep.mubr.f32.mxu0 %v1050
        %1341 = vmatmul.mubr.f32.gmra.mrb[0].mxu0 %v1049
        %v1342 = vpop.f32.mrb[0].mxu0
        %v1343 = vadd.f32 %v1272, %v1342
        %v1344 = vpop.f32.mrb[0].mxu0
        %v1345 = vadd.f32 %v1274, %v1344
        %1346 = vdwg.mxu0
        %v1347 = vmax.f32 %v1343, 0.0
        %v1348 = vmax.f32 %v1345, 0.0
        %s1349 = smul.u32 %s31, 256
        %s1350 = sshra.s32 %s1349, 7
        %s1351 = sand.u32 %s1349, 127
        %s1352 = smul.u32 %s398, 8
        %s1353 = sadd.s32 %s1350, %s1352
        %s1354 = smul.addr %s1353, 8
        %s1355 = scalar_lea.vmem [#allocation2], %s1354
        %1356 = vst [vmem:[%s1355] sm:$0xff] %v1347
        %1357 = vst [vmem:[%s1355 + $0x8] sm:$0xff] %v1348
        %p1358 = scmp.eq.s32.totalorder %s30, 1
        %p1359 = scmp.eq.s32.totalorder %s31, 3
        %p1360 = pnand %p1358, %p1359
        %p1361 = pneg %p1360
        // Predicated region
        $region77: #{net_forward.1} parent=47 // pred_check
          _
        $region78: #{net_forward.1} parent=47 // pred_check_branch
          %1363 = sbr.rel (%p1360) target = $region80
        $region79: #{net_forward.1} parent=47 // pred_region
          %s1364 = smul.addr %s1352, 8
          %s1365 = scalar_lea.vmem [#allocation2], %s1364
          %v1366 = vld [vmem:[%s1365] sm:$0xff]
          %v1367 = vld [vmem:[%s1365 + $0x8] sm:$0xff]
          %v1368 = vld [vmem:[%s1365 + $0x10] sm:$0xff]
          %v1369 = vld [vmem:[%s1365 + $0x18] sm:$0xff]
          %v1370 = vld [vmem:[%s1365 + $0x20] sm:$0xff]
          %v1371 = vld [vmem:[%s1365 + $0x28] sm:$0xff]
          %v1372 = vld [vmem:[%s1365 + $0x30] sm:$0xff]
          %v1373 = vld [vmem:[%s1365 + $0x38] sm:$0xff]
          %v1374 = vld [vmem:[#allocation12] sm:$0xff]
          %v1376 = vlaneseq
          %v1377 = vshrl.u32 %v1376, 7
          %v1378 = vsub.s32 0, %v1377
          %v1379 = vrot.slane %v1374, %v1378
          %v1380 = vlaneseq
          %v1381 = vshrl.u32 %v1380, 7
          %v1382 = vsub.s32 1, %v1381
          %v1383 = vrot.slane %v1374, %v1382
          %v1384 = vlaneseq
          %v1385 = vshrl.u32 %v1384, 7
          %v1386 = vsub.s32 2, %v1385
          %v1387 = vrot.slane %v1374, %v1386
          %v1388 = vlaneseq
          %v1389 = vshrl.u32 %v1388, 7
          %v1390 = vsub.s32 3, %v1389
          %v1391 = vrot.slane %v1374, %v1390
          %v1392 = vlaneseq
          %v1393 = vshrl.u32 %v1392, 7
          %v1394 = vsub.s32 4, %v1393
          %v1395 = vrot.slane %v1374, %v1394
          %v1396 = vlaneseq
          %v1397 = vshrl.u32 %v1396, 7
          %v1398 = vsub.s32 5, %v1397
          %v1399 = vrot.slane %v1374, %v1398
          %v1400 = vlaneseq
          %v1401 = vshrl.u32 %v1400, 7
          %v1402 = vsub.s32 6, %v1401
          %v1403 = vrot.slane %v1374, %v1402
          %v1404 = vlaneseq
          %v1405 = vshrl.u32 %v1404, 7
          %v1406 = vsub.s32 7, %v1405
          %v1407 = vrot.slane %v1374, %v1406
          %v1416 = vmul.f32 %v1366, %v1379
          %v1417 = vmul.f32 %v1367, %v1383
          %v1418 = vmul.f32 %v1368, %v1387
          %v1419 = vmul.f32 %v1369, %v1391
          %v1420 = vmul.f32 %v1370, %v1395
          %v1421 = vmul.f32 %v1371, %v1399
          %v1422 = vmul.f32 %v1372, %v1403
          %v1423 = vmul.f32 %v1373, %v1407
          %v1424 = vadd.f32 %v1416, %v1417
          %v1425 = vadd.f32 %v1424, %v1418
          %v1426 = vadd.f32 %v1425, %v1419
          %v1427 = vadd.f32 %v1426, %v1420
          %v1428 = vadd.f32 %v1427, %v1421
          %v1429 = vadd.f32 %v1428, %v1422
          %v1430 = vadd.f32 %v1429, %v1423
          %1431 = vadd.xlane.f32.xlu0 %v1430
          %v1432 = vpop.xlane.xlu0 %1431
          %v1433 = vld [vmem:[#allocation3] sm:$0x1]
          %v1435 = vlaneseq
          %v1436 = vshrl.u32 %v1435, 7
          %v1437 = vsub.s32 0, %v1436
          %v1438 = vrot.slane %v1433, %v1437
          %v1440 = vadd.f32 %v1432, %v1438
          %vm1441 = vcmask 7168
          %1442 = vst.msk [vmem:[%s7] sm:$0xff] %vm1441, %v1440
        $region80: #{net_forward.1} parent=47 // pred_fallthru
          _
        // Predicated region
        $region81: #{net_forward.1} parent=47 // pred_check
          %p1443 = pneg %p212
        $region82: #{net_forward.1} parent=47 // pred_check_branch
          %1445 = sbr.rel (%p1443) target = $region84
        $region83: #{net_forward.1} parent=47 // pred_region
          _
        $region84: #{net_forward.1} parent=47 // pred_fallthru
          _
        // Predicated region
        $region85: #{net_forward.1} parent=47 // pred_check
          %p1446 = pneg %p212
        $region86: #{net_forward.1} parent=47 // pred_check_branch
          %1448 = sbr.rel (%p1446) target = $region88
        $region87: #{net_forward.1} parent=47 // pred_region
          _
        $region88: #{net_forward.1} parent=47 // pred_fallthru
          _
      $region48: #{net_forward.1} parent=5 // pred_fallthru
        _
      %p1449 = scmp.le.s32.totalorder 2, %s21
      // Predicated region
      $region89: #{net_forward.1} parent=5 // pred_check
        %p1450 = pneg %p1449
      $region90: #{net_forward.1} parent=5 // pred_check_branch
        %1452 = sbr.rel (%p1450) target = $region92
      $region91: #{net_forward.1} parent=5 // pred_region
        %s1453 = ssub.s32 %s21, 2
      $region92: #{net_forward.1} parent=5 // pred_fallthru
        _
    $region6: #{net_forward.1} parent=1 // loop_footer
      %s25 = sadd.s32 1, %s21
    $region7: #{net_forward.1} parent=1 // loop_footer_branch
      %20 = sbr.rel target = $region3
    $region8: #{net_forward.1} parent=1 // loop_exit
      _
    %1454 = vsyncpa [#allocation5], 1
    %s1455 = scalar_lea.sflag [#allocation5], 1
    %1456 = vsyncpa %s1455, 1
    %1457 = vsyncpa [#allocation7], 1
    %1458 = vsyncpa [#allocation10], 1
    %s1459 = scalar_lea.sflag [#allocation10], 1
    %1460 = vsyncpa %s1459, 1
    %1461 = vsyncpa [#allocation13], 1

</llo_original>
